<compile_context>
chip_gen: v5e
topology: v5e:2x2
jax: 0.10.0
libtpu: 0.0.40
codegen_flags: <defaults>
</compile_context>

<pallas_src>
import functools
import math

import jax
import jax.numpy as jnp
import numpy as np
from jax.experimental import pallas as pl
from jax.experimental.pallas import tpu as pltpu


# ----------------------------------------------------------------------------
# helpers
# ----------------------------------------------------------------------------
def _vmem_capacity_bytes():
    """Physical VMEM per TensorCore (fallback: conservative 64 MiB)."""
    try:
        info = pltpu.get_tpu_info()
        for name in ("vmem_capacity_bytes", "vmem_size_bytes", "vmem_bytes"):
            v = getattr(info, name, None)
            if v:
                return int(v)
    except Exception:
        pass
    return 64 * 1024 * 1024


def _divisor_tile(n, target):
    """Largest divisor of n that is <= target and a multiple of 128 (or n itself)."""
    if n <= target:
        return n
    t = (target // 128) * 128
    while t > 0:
        if n % t == 0:
            return t
        t -= 128
    return n


# ----------------------------------------------------------------------------
# Kernel 1: RMSNorm -> adaLN modulate -> QKV proj -> qk-LayerNorm -> RoPE
# grid = (B, S // TS).  The even/odd RoPE de-interleave is folded into Wq/Wk
# (and the qk-LN params) in the wrapper, so per-head rotation works on
# contiguous half-blocks.  1/sqrt(hd) is folded into qn_w/qn_b.
# ----------------------------------------------------------------------------
def _qkv_kernel(x_ref, mod_ref, cos_ref, sin_ref, attn_nw_ref,
                qn_w_ref, qn_b_ref, kn_w_ref, kn_b_ref,
                wq_ref, wk_ref, wv_ref,
                q_ref, k_ref, v_ref,
                *, norm_eps, ln_eps, n_heads, n_kv_heads, hd):
    f32 = jnp.float32
    half = hd // 2
    x = x_ref[0].astype(f32)                   # (TS, D)
    mod = mod_ref[0]                           # (6, D)  f32
    shift_msa = mod[0:1, :]
    scale_msa = mod[1:2, :]

    # RMSNorm + adaLN modulate (f32 math)
    xn = x * jax.lax.rsqrt(jnp.mean(x * x, axis=-1, keepdims=True) + norm_eps)
    xm = (xn * attn_nw_ref[...]) * (1.0 + scale_msa) + shift_msa
    xm_b = xm.astype(jnp.bfloat16)

    q = jnp.dot(xm_b, wq_ref[...], preferred_element_type=f32)   # (TS, D)
    k = jnp.dot(xm_b, wk_ref[...], preferred_element_type=f32)   # (TS, Dk)
    v = jnp.dot(xm_b, wv_ref[...], preferred_element_type=f32)   # (TS, Dk)

    def _ln(t, w, b):   # full-width LayerNorm (f32)
        mu = jnp.mean(t, axis=-1, keepdims=True)
        var = jnp.mean((t - mu) * (t - mu), axis=-1, keepdims=True)
        return (t - mu) * jax.lax.rsqrt(var + ln_eps) * w + b

    q = _ln(q, qn_w_ref[...], qn_b_ref[...])   # 1/sqrt(hd) already in qn_w/qn_b
    k = _ln(k, kn_w_ref[...], kn_b_ref[...])

    cos = cos_ref[...]                         # (TS, hd/2)
    sin = sin_ref[...]

    def _rope(t, nh):                          # per-head contiguous half rotation
        parts = []
        for h in range(nh):
            a = t[:, h * hd: h * hd + half]
            b = t[:, h * hd + half: (h + 1) * hd]
            parts.append(a * cos - b * sin)
            parts.append(b * cos + a * sin)
        return jnp.concatenate(parts, axis=-1)

    q_ref[0] = _rope(q, n_heads).astype(q_ref.dtype)
    k_ref[0] = _rope(k, n_kv_heads).astype(k_ref.dtype)
    v_ref[0] = v.astype(v_ref.dtype)


# ----------------------------------------------------------------------------
# Kernel 2: non-causal flash attention with GQA K/V reuse.
# grid = (B*Hkv, S//TQ, S//TK).  All n_rep query heads of a KV group share the
# same K/V tile (they are just extra softmax rows), so K/V is streamed once
# per group.  Q arrives pre-scaled and pre-rotated.
# ----------------------------------------------------------------------------
def _attn_kernel(q_ref, k_ref, v_ref, o_ref, m_scr, l_scr, acc_scr,
                 *, approx_recip):
    f32 = jnp.float32
    ki = pl.program_id(2)

    @pl.when(ki == 0)
    def _():
        m_scr[...] = jnp.full_like(m_scr, -jnp.inf)
        l_scr[...] = jnp.zeros_like(l_scr)
        acc_scr[...] = jnp.zeros_like(acc_scr)

    nr, tq, hd = q_ref.shape[1], q_ref.shape[2], q_ref.shape[3]
    qg = q_ref[0].reshape(nr * tq, hd)         # (nr*TQ, hd) bf16
    kt = k_ref[0]                              # (TK, hd)    bf16
    vt = v_ref[0]                              # (TK, hd)    bf16

    sc = jax.lax.dot_general(qg, kt, (((1,), (1,)), ((), ())),
                             preferred_element_type=f32)       # (nr*TQ, TK)
    m_prev = m_scr[...]
    m_new = jnp.maximum(m_prev, jnp.max(sc, axis=-1, keepdims=True))
    alpha = jnp.exp(m_prev - m_new)
    p = jnp.exp(sc - m_new)
    l_scr[...] = alpha * l_scr[...] + jnp.sum(p, axis=-1, keepdims=True)
    acc_scr[...] = alpha * acc_scr[...] + jnp.dot(
        p.astype(jnp.bfloat16), vt, preferred_element_type=f32)
    m_scr[...] = m_new

    @pl.when(ki == pl.num_programs(2) - 1)
    def _():
        if approx_recip:
            out = acc_scr[...] * pl.reciprocal(l_scr[...], approx=True)
        else:
            out = acc_scr[...] / l_scr[...]
        o_ref[0] = out.reshape(nr, tq, hd).astype(o_ref.dtype)


# ----------------------------------------------------------------------------
# Kernel 3: Wo proj -> residual -> RMSNorm -> modulate -> SwiGLU FFN.
# grid = (B, S//TS, Fh//TF): the FFN hidden dim is tiled so W1/W3/W2 are never
# fully resident; h1 / modulated-input / FFN partial sums live in scratch.
# ----------------------------------------------------------------------------
def _out_ffn_kernel(x_ref, attn_ref, mod_ref, wo_ref, ffn_nw_ref,
                    w1_ref, w3_ref, w2_ref, out_ref,
                    h1_scr, hm_scr, ff_scr, *, norm_eps):
    f32 = jnp.float32
    kf = pl.program_id(2)
    mod = mod_ref[0]                           # (6, D) f32
    gate_msa = mod[2:3, :]
    shift_mlp = mod[3:4, :]
    scale_mlp = mod[4:5, :]
    gate_mlp = mod[5:6, :]

    @pl.when(kf == 0)
    def _():
        x = x_ref[0].astype(f32)
        attn_out = jnp.dot(attn_ref[0], wo_ref[...], preferred_element_type=f32)
        h1 = x + gate_msa * attn_out
        h1_scr[...] = h1
        hn = h1 * jax.lax.rsqrt(jnp.mean(h1 * h1, axis=-1, keepdims=True) + norm_eps)
        hm_scr[...] = ((hn * ffn_nw_ref[...]) * (1.0 + scale_mlp)
                       + shift_mlp).astype(jnp.bfloat16)
        ff_scr[...] = jnp.zeros_like(ff_scr)

    hm = hm_scr[...]                                           # (TS, D) bf16
    a1 = jnp.dot(hm, w1_ref[...], preferred_element_type=f32)  # (TS, TF)
    a3 = jnp.dot(hm, w3_ref[...], preferred_element_type=f32)
    g = (a1 * jax.nn.sigmoid(a1) * a3).astype(jnp.bfloat16)    # SiLU(a1) * a3
    ff_scr[...] += jnp.dot(g, w2_ref[...], preferred_element_type=f32)

    @pl.when(kf == pl.num_programs(2) - 1)
    def _():
        out_ref[0] = (h1_scr[...] + gate_mlp * ff_scr[...]).astype(out_ref.dtype)


# ----------------------------------------------------------------------------
# Wrapper
# ----------------------------------------------------------------------------
def transformer_block_forward(x, freqs_cos, freqs_sin, adaln_input, params, cfg,
                              approx_recip=True):
    f32, bf16 = jnp.float32, jnp.bfloat16
    B, S, D = x.shape
    H, Hkv = cfg["n_heads"], cfg["n_kv_heads"]
    assert H % Hkv == 0
    hd = D // H
    assert hd % 2 == 0
    half = hd // 2
    Dk = Hkv * hd
    n_rep = H // Hkv
    Fh = params["w1"].shape[0]
    eps = cfg["norm_eps"]
    ln_eps = cfg.get("qk_ln_eps", 1e-5)

    # ---- generation-aware VMEM / tile strategy --------------------------------
    vmem_cap = _vmem_capacity_bytes()
    big_vmem = vmem_cap >= 100 * 1024 * 1024          # v5e/v6e (128 MiB) vs v7x (64 MiB)
    vmem_limit = int(vmem_cap * 3 // 4)               # ~96 MiB / ~48 MiB

    TS = _divisor_tile(S, 512 if big_vmem else 256)
    grp_q = 1024 if big_vmem else 512                 # query rows sharing one K/V tile
    TQ = _divisor_tile(S, max(128, grp_q // max(n_rep, 1)))
    TK = _divisor_tile(S, 1024 if big_vmem else 512)
    TF = _divisor_tile(Fh, 2048 if big_vmem else 1024)
    assert S % TS == 0 and S % TQ == 0 and S % TK == 0 and Fh % TF == 0

    # ---- adaLN modulation hoisted to XLA (tiny matmul) -------------------------
    ada = adaln_input.astype(f32)
    mod = (ada * jax.nn.sigmoid(ada)) @ params["ada_w"].T.astype(f32) \
        + params["ada_b"].astype(f32)
    mod = mod.reshape(B, 6, D)   # rows: shift/scale/gate (msa), shift/scale/gate (mlp)

    # ---- fold even/odd RoPE de-interleave into Wq/Wk and the qk-LN params;
    #      fold 1/sqrt(hd) into the q LayerNorm weight/bias (RoPE is linear).
    perm_head = np.concatenate([np.arange(0, hd, 2), np.arange(1, hd, 2)])
    perm_q = (np.arange(H)[:, None] * hd + perm_head[None, :]).reshape(-1)
    perm_k = (np.arange(Hkv)[:, None] * hd + perm_head[None, :]).reshape(-1)

    wq_t = params["wq"].T[:, perm_q].astype(bf16)          # (D, D)
    wk_t = params["wk"].T[:, perm_k].astype(bf16)          # (D, Dk)
    wv_t = params["wv"].T.astype(bf16)                     # (D, Dk)
    wo_t = params["wo"].T.astype(bf16)                     # (D, D)
    w1_t = params["w1"].T.astype(bf16)                     # (D, Fh)
    w3_t = params["w3"].T.astype(bf16)                     # (D, Fh)
    w2_t = params["w2"].T.astype(bf16)                     # (Fh, D)

    scale = 1.0 / math.sqrt(hd)
    row = lambda v: v.reshape(1, -1).astype(f32)
    qn_w = row(params["qn_w"][perm_q]) * scale
    qn_b = row(params["qn_b"][perm_q]) * scale
    kn_w, kn_b = row(params["kn_w"][perm_k]), row(params["kn_b"][perm_k])
    attn_nw, ffn_nw = row(params["attn_nw"]), row(params["ffn_nw"])

    cp2 = pltpu.CompilerParams(
        dimension_semantics=("parallel", "parallel"),
        vmem_limit_bytes=vmem_limit)
    cp3 = pltpu.CompilerParams(
        dimension_semantics=("parallel", "parallel", "arbitrary"),
        vmem_limit_bytes=vmem_limit)

    # ---------------- kernel 1: QKV + qk-LN + RoPE ----------------
    q, k, v = pl.pallas_call(
        functools.partial(_qkv_kernel, norm_eps=eps, ln_eps=ln_eps,
                          n_heads=H, n_kv_heads=Hkv, hd=hd),
        out_shape=(jax.ShapeDtypeStruct((B, S, D), bf16),
                   jax.ShapeDtypeStruct((B, S, Dk), bf16),
                   jax.ShapeDtypeStruct((B, S, Dk), bf16)),
        grid_spec=pltpu.PrefetchScalarGridSpec(
            num_scalar_prefetch=0,
            grid=(B, S // TS),
            in_specs=[
                pl.BlockSpec((1, TS, D), lambda b, si: (b, si, 0)),
                pl.BlockSpec((1, 6, D), lambda b, si: (b, 0, 0)),
                pl.BlockSpec((TS, half), lambda b, si: (si, 0)),
                pl.BlockSpec((TS, half), lambda b, si: (si, 0)),
                pl.BlockSpec((1, D), lambda b, si: (0, 0)),
                pl.BlockSpec((1, D), lambda b, si: (0, 0)),
                pl.BlockSpec((1, D), lambda b, si: (0, 0)),
                pl.BlockSpec((1, Dk), lambda b, si: (0, 0)),
                pl.BlockSpec((1, Dk), lambda b, si: (0, 0)),
                pl.BlockSpec((D, D), lambda b, si: (0, 0)),
                pl.BlockSpec((D, Dk), lambda b, si: (0, 0)),
                pl.BlockSpec((D, Dk), lambda b, si: (0, 0)),
            ],
            out_specs=[
                pl.BlockSpec((1, TS, D), lambda b, si: (b, si, 0)),
                pl.BlockSpec((1, TS, Dk), lambda b, si: (b, si, 0)),
                pl.BlockSpec((1, TS, Dk), lambda b, si: (b, si, 0)),
            ]),
        compiler_params=cp2,
    )(x, mod, freqs_cos.astype(f32), freqs_sin.astype(f32),
      attn_nw, qn_w, qn_b, kn_w, kn_b, wq_t, wk_t, wv_t)

    # ---- GQA-grouped head relayout (XLA layout plumbing)
    q_h = (q.reshape(B, S, Hkv, n_rep, hd)
             .transpose(0, 2, 3, 1, 4)
             .reshape(B * Hkv, n_rep, S, hd))
    k_h = k.reshape(B, S, Hkv, hd).transpose(0, 2, 1, 3).reshape(B * Hkv, S, hd)
    v_h = v.reshape(B, S, Hkv, hd).transpose(0, 2, 1, 3).reshape(B * Hkv, S, hd)

    # ---------------- kernel 2: flash attention (GQA K/V reuse) ----------------
    o_h = pl.pallas_call(
        functools.partial(_attn_kernel, approx_recip=approx_recip),
        out_shape=jax.ShapeDtypeStruct((B * Hkv, n_rep, S, hd), bf16),
        grid_spec=pltpu.PrefetchScalarGridSpec(
            num_scalar_prefetch=0,
            grid=(B * Hkv, S // TQ, S // TK),
            in_specs=[
                pl.BlockSpec((1, n_rep, TQ, hd), lambda g, qi, ki: (g, 0, qi, 0)),
                pl.BlockSpec((1, TK, hd), lambda g, qi, ki: (g, ki, 0)),
                pl.BlockSpec((1, TK, hd), lambda g, qi, ki: (g, ki, 0)),
            ],
            out_specs=pl.BlockSpec((1, n_rep, TQ, hd),
                                   lambda g, qi, ki: (g, 0, qi, 0)),
            scratch_shapes=[
                pltpu.VMEM((n_rep * TQ, 1), f32),     # running max
                pltpu.VMEM((n_rep * TQ, 1), f32),     # running sum
                pltpu.VMEM((n_rep * TQ, hd), f32),    # output accumulator
            ]),
        compiler_params=pltpu.CompilerParams(
            dimension_semantics=("parallel", "parallel", "arbitrary"),
            vmem_limit_bytes=vmem_limit),
    )(q_h, k_h, v_h)

    attn = (o_h.reshape(B, Hkv, n_rep, S, hd)
               .transpose(0, 3, 1, 2, 4)
               .reshape(B, S, D))

    # ---------------- kernel 3: Wo + residual + SwiGLU FFN (hidden-dim tiled) ----
    out = pl.pallas_call(
        functools.partial(_out_ffn_kernel, norm_eps=eps),
        out_shape=jax.ShapeDtypeStruct((B, S, D), x.dtype),
        grid_spec=pltpu.PrefetchScalarGridSpec(
            num_scalar_prefetch=0,
            grid=(B, S // TS, Fh // TF),
            in_specs=[
                pl.BlockSpec((1, TS, D), lambda b, si, kf: (b, si, 0)),
                pl.BlockSpec((1, TS, D), lambda b, si, kf: (b, si, 0)),
                pl.BlockSpec((1, 6, D), lambda b, si, kf: (b, 0, 0)),
                pl.BlockSpec((D, D), lambda b, si, kf: (0, 0)),
                pl.BlockSpec((1, D), lambda b, si, kf: (0, 0)),
                pl.BlockSpec((D, TF), lambda b, si, kf: (0, kf)),
                pl.BlockSpec((D, TF), lambda b, si, kf: (0, kf)),
                pl.BlockSpec((TF, D), lambda b, si, kf: (kf, 0)),
            ],
            out_specs=pl.BlockSpec((1, TS, D), lambda b, si, kf: (b, si, 0)),
            scratch_shapes=[
                pltpu.VMEM((TS, D), f32),     # h1 (post-attention residual)
                pltpu.VMEM((TS, D), bf16),    # modulated FFN input
                pltpu.VMEM((TS, D), f32),     # FFN output accumulator
            ]),
        compiler_params=cp3,
    )(x, attn, mod, wo_t, ffn_nw, w1_t, w3_t, w2_t)

    return out


# ----------------------------------------------------------------------------
# Pure-JAX reference (mirror of the PyTorch TransformerBlock.forward, fp32 SDPA)
# ----------------------------------------------------------------------------
def reference_forward(x, freqs_cos, freqs_sin, adaln_input, params, cfg):
    B, S, D = x.shape
    H, Hkv = cfg["n_heads"], cfg["n_kv_heads"]
    hd = D // H
    n_rep = H // Hkv
    eps = cfg["norm_eps"]
    ln_eps = cfg.get("qk_ln_eps", 1e-5)
    silu = lambda t: t * jax.nn.sigmoid(t)

    mod = silu(adaln_input) @ params["ada_w"].T + params["ada_b"]
    shift_msa, scale_msa, gate_msa, shift_mlp, scale_mlp, gate_mlp = jnp.split(mod, 6, axis=1)

    rms = lambda t, w: t * jax.lax.rsqrt(jnp.mean(t * t, -1, keepdims=True) + eps) * w

    def ln(t, w, b):
        m = jnp.mean(t, -1, keepdims=True)
        var = jnp.mean((t - m) ** 2, -1, keepdims=True)
        return (t - m) / jnp.sqrt(var + ln_eps) * w + b

    modulate = lambda t, sh, sc: t * (1 + sc[:, None, :]) + sh[:, None, :]

    def rope(t, nh):
        t4 = t.reshape(B, S, nh, hd)
        tc = t4[..., 0::2] + 1j * t4[..., 1::2]
        fc = (freqs_cos + 1j * freqs_sin)[None, :, None, :]
        to = tc * fc
        return jnp.stack([jnp.real(to), jnp.imag(to)], axis=-1).reshape(B, S, nh, hd)

    xm = modulate(rms(x, params["attn_nw"]), shift_msa, scale_msa)
    q = ln(xm @ params["wq"].T, params["qn_w"], params["qn_b"])
    k = ln(xm @ params["wk"].T, params["kn_w"], params["kn_b"])
    v = (xm @ params["wv"].T).reshape(B, S, Hkv, hd)
    q = rope(q, H)
    k = rope(k, Hkv)
    kr = jnp.repeat(k, n_rep, axis=2)
    vr = jnp.repeat(v, n_rep, axis=2)

    scores = jnp.einsum("bshd,bthd->bhst", q, kr) / math.sqrt(hd)
    attn = jax.nn.softmax(scores, axis=-1)
    o = jnp.einsum("bhst,bthd->bshd", attn, vr).reshape(B, S, D)
    attn_out = o @ params["wo"].T
    h1 = x + gate_msa[:, None, :] * attn_out

    hm = modulate(rms(h1, params["ffn_nw"]), shift_mlp, scale_mlp)
    ff = (silu(hm @ params["w1"].T) * (hm @ params["w3"].T)) @ params["w2"].T
    return h1 + gate_mlp[:, None, :] * ff


if __name__ == "__main__":
    # small config consistent with TransformerBlock(__init__)
    B, S = 2, 16
    dim = 32
    n_heads, n_kv_heads = 4, 2
    multiple_of = 32
    ffn_dim_multiplier = 1.0
    norm_eps = 1e-5
    head_dim = dim // n_heads
    Dk = n_kv_heads * head_dim
    Dc = min(dim, 1024)

    # FeedForward hidden dim exactly as in the module
    hidden = int(2 * (4 * dim) / 3)
    hidden = int(ffn_dim_multiplier * hidden)
    hidden = multiple_of * ((hidden + multiple_of - 1) // multiple_of)   # = 96

    key = jax.random.PRNGKey(0)
    ks = jax.random.split(key, 16)
    f32 = jnp.float32
    n = lambda k, shape, s=0.02: (s * jax.random.normal(k, shape)).astype(f32)

    params = {
        "wq": n(ks[0], (dim, dim)),
        "wk": n(ks[1], (Dk, dim)),
        "wv": n(ks[2], (Dk, dim)),
        "wo": n(ks[3], (dim, dim)),
        "qn_w": (1.0 + 0.1 * jax.random.normal(ks[4], (dim,))).astype(f32),
        "qn_b": n(ks[5], (dim,), 0.05),
        "kn_w": (1.0 + 0.1 * jax.random.normal(ks[6], (Dk,))).astype(f32),
        "kn_b": n(ks[7], (Dk,), 0.05),
        "attn_nw": (1.0 + 0.1 * jax.random.normal(ks[8], (dim,))).astype(f32),
        "ffn_nw": (1.0 + 0.1 * jax.random.normal(ks[9], (dim,))).astype(f32),
        "w1": n(ks[10], (hidden, dim)),
        "w3": n(ks[11], (hidden, dim)),
        "w2": n(ks[12], (dim, hidden)),
        "ada_w": n(ks[13], (6 * dim, Dc)),
        "ada_b": (0.5 * jax.random.normal(ks[14], (6 * dim,))).astype(f32),
    }

    # rotary frequencies (cos/sin form of freqs_cis with theta=10000)
    theta = 10000.0
    inv_freq = 1.0 / (theta ** (np.arange(0, head_dim, 2, dtype=np.float32) / head_dim))
    ang = np.outer(np.arange(S, dtype=np.float32), inv_freq)    # (S, hd/2)
    freqs_cos = jnp.asarray(np.cos(ang), dtype=f32)
    freqs_sin = jnp.asarray(np.sin(ang), dtype=f32)

    kx, ka = jax.random.split(ks[15])
    x = jax.random.normal(kx, (B, S, dim), dtype=f32)
    adaln_input = jax.random.normal(ka, (B, Dc), dtype=f32)

    cfg = {"n_heads": n_heads, "n_kv_heads": n_kv_heads,
           "norm_eps": norm_eps, "qk_ln_eps": 1e-5}

    out = transformer_block_forward(x, freqs_cos, freqs_sin, adaln_input, params, cfg)
    out = jax.block_until_ready(out)

    ref = reference_forward(x, freqs_cos, freqs_sin, adaln_input, params, cfg)
    ref = jax.block_until_ready(ref)

    assert out.shape == (B, S, dim)
    assert np.allclose(np.asarray(out), np.asarray(ref), rtol=1e-2, atol=1e-2), \
        f"max abs err = {np.max(np.abs(np.asarray(out) - np.asarray(ref)))}"

    print("KERNEL_OK")
</pallas_src>

<mosaic_0001>
module attributes {stable_mosaic.version = 11 : i64} {
  func.func @_qkv_kernel(%arg0: i32, %arg1: i32, %arg2: memref<1x16x32xf32, #tpu.memory_space<vmem>>, %arg3: memref<1x6x32xf32, #tpu.memory_space<vmem>>, %arg4: memref<16x4xf32, #tpu.memory_space<vmem>>, %arg5: memref<16x4xf32, #tpu.memory_space<vmem>>, %arg6: memref<1x32xf32, #tpu.memory_space<vmem>>, %arg7: memref<1x32xf32, #tpu.memory_space<vmem>>, %arg8: memref<1x32xf32, #tpu.memory_space<vmem>>, %arg9: memref<1x16xf32, #tpu.memory_space<vmem>>, %arg10: memref<1x16xf32, #tpu.memory_space<vmem>>, %arg11: memref<32x32xbf16, #tpu.memory_space<vmem>>, %arg12: memref<32x16xbf16, #tpu.memory_space<vmem>>, %arg13: memref<32x16xbf16, #tpu.memory_space<vmem>>, %arg14: memref<1x16x32xbf16, #tpu.memory_space<vmem>>, %arg15: memref<1x16x16xbf16, #tpu.memory_space<vmem>>, %arg16: memref<1x16x16xbf16, #tpu.memory_space<vmem>>) attributes {dimension_semantics = [#tpu.dimension_semantics<parallel>, #tpu.dimension_semantics<parallel>], iteration_bounds = array<i64: 2, 1>, scalar_prefetch = 0 : i64, scratch_operands = 0 : i64, tpu.core_type = #tpu.core_type<tc>, window_params = [{transform_indices = @transform_0, window_bounds = array<i64: 1, 16, 32>}, {transform_indices = @transform_1, window_bounds = array<i64: 1, 6, 32>}, {transform_indices = @transform_2, window_bounds = array<i64: 16, 4>}, {transform_indices = @transform_3, window_bounds = array<i64: 16, 4>}, {pipeline_mode = #tpu.pipeline_mode<synchronous>, transform_indices = @transform_4, window_bounds = array<i64: 1, 32>}, {pipeline_mode = #tpu.pipeline_mode<synchronous>, transform_indices = @transform_5, window_bounds = array<i64: 1, 32>}, {pipeline_mode = #tpu.pipeline_mode<synchronous>, transform_indices = @transform_6, window_bounds = array<i64: 1, 32>}, {pipeline_mode = #tpu.pipeline_mode<synchronous>, transform_indices = @transform_7, window_bounds = array<i64: 1, 16>}, {pipeline_mode = #tpu.pipeline_mode<synchronous>, transform_indices = @transform_8, window_bounds = array<i64: 1, 16>}, {pipeline_mode = #tpu.pipeline_mode<synchronous>, transform_indices = @transform_9, window_bounds = array<i64: 32, 32>}, {pipeline_mode = #tpu.pipeline_mode<synchronous>, transform_indices = @transform_10, window_bounds = array<i64: 32, 16>}, {pipeline_mode = #tpu.pipeline_mode<synchronous>, transform_indices = @transform_11, window_bounds = array<i64: 32, 16>}, {transform_indices = @transform_12, window_bounds = array<i64: 1, 16, 32>}, {transform_indices = @transform_13, window_bounds = array<i64: 1, 16, 16>}, {transform_indices = @transform_14, window_bounds = array<i64: 1, 16, 16>}]} {
    %c0 = arith.constant 0 : index
    %c0_0 = arith.constant 0 : index
    %c0_1 = arith.constant 0 : index
    %0 = vector.load %arg2[%c0, %c0_0, %c0_1] : memref<1x16x32xf32, #tpu.memory_space<vmem>>, vector<1x16x32xf32>
    %1 = vector.shape_cast %0 : vector<1x16x32xf32> to vector<16x32xf32>
    %c0_2 = arith.constant 0 : index
    %c0_3 = arith.constant 0 : index
    %c0_4 = arith.constant 0 : index
    %2 = vector.load %arg3[%c0_2, %c0_3, %c0_4] : memref<1x6x32xf32, #tpu.memory_space<vmem>>, vector<1x6x32xf32>
    %3 = vector.shape_cast %2 : vector<1x6x32xf32> to vector<6x32xf32>
    %4 = vector.extract_strided_slice %3 {offsets = [0, 0], sizes = [1, 32], strides = [1, 1]} : vector<6x32xf32> to vector<1x32xf32>
    %5 = vector.extract_strided_slice %3 {offsets = [1, 0], sizes = [1, 32], strides = [1, 1]} : vector<6x32xf32> to vector<1x32xf32>
    %6 = arith.mulf %1, %1 : vector<16x32xf32>
    %cst = arith.constant dense<0.000000e+00> : vector<16xf32>
    %7 = vector.multi_reduction <add>, %6, %cst [1] : vector<16x32xf32> to vector<16xf32>
    %8 = vector.shape_cast %7 : vector<16xf32> to vector<16x1xf32>
    %cst_5 = arith.constant 3.200000e+01 : f32
    %9 = vector.broadcast %cst_5 : f32 to vector<16x1xf32>
    %10 = arith.divf %8, %9 : vector<16x1xf32>
    %cst_6 = arith.constant 9.99999974E-6 : f32
    %11 = vector.broadcast %cst_6 : f32 to vector<16x1xf32>
    %12 = arith.addf %10, %11 : vector<16x1xf32>
    %13 = math.rsqrt %12 : vector<16x1xf32>
    %14 = vector.broadcast %13 : vector<16x1xf32> to vector<16x32xf32>
    %15 = arith.mulf %1, %14 : vector<16x32xf32>
    %c0_7 = arith.constant 0 : index
    %c0_8 = arith.constant 0 : index
    %16 = vector.load %arg6[%c0_7, %c0_8] : memref<1x32xf32, #tpu.memory_space<vmem>>, vector<1x32xf32>
    %17 = vector.broadcast %16 : vector<1x32xf32> to vector<16x32xf32>
    %18 = arith.mulf %15, %17 : vector<16x32xf32>
    %cst_9 = arith.constant 1.000000e+00 : f32
    %19 = vector.broadcast %cst_9 : f32 to vector<1x32xf32>
    %20 = arith.addf %19, %5 : vector<1x32xf32>
    %21 = vector.broadcast %20 : vector<1x32xf32> to vector<16x32xf32>
    %22 = arith.mulf %18, %21 : vector<16x32xf32>
    %23 = vector.broadcast %4 : vector<1x32xf32> to vector<16x32xf32>
    %24 = arith.addf %22, %23 : vector<16x32xf32>
    %25 = arith.truncf %24 : vector<16x32xf32> to vector<16x32xbf16>
    %c0_10 = arith.constant 0 : index
    %c0_11 = arith.constant 0 : index
    %26 = vector.load %arg11[%c0_10, %c0_11] : memref<32x32xbf16, #tpu.memory_space<vmem>>, vector<32x32xbf16>
    %cst_12 = arith.constant dense<0.000000e+00> : vector<16x32xf32>
    %27 = tpu.matmul %25, %26, %cst_12 {dimension_numbers = #tpu.dot_dimension_numbers<[1], [0], [0], [1], [0, 0, 1, 1], [], []>} : vector<16x32xbf16>, vector<32x32xbf16>, vector<16x32xf32> -> vector<16x32xf32>
    %c0_13 = arith.constant 0 : index
    %c0_14 = arith.constant 0 : index
    %28 = vector.load %arg12[%c0_13, %c0_14] : memref<32x16xbf16, #tpu.memory_space<vmem>>, vector<32x16xbf16>
    %cst_15 = arith.constant dense<0.000000e+00> : vector<16x16xf32>
    %29 = tpu.matmul %25, %28, %cst_15 {dimension_numbers = #tpu.dot_dimension_numbers<[1], [0], [0], [1], [0, 0, 1, 1], [], []>} : vector<16x32xbf16>, vector<32x16xbf16>, vector<16x16xf32> -> vector<16x16xf32>
    %c0_16 = arith.constant 0 : index
    %c0_17 = arith.constant 0 : index
    %30 = vector.load %arg13[%c0_16, %c0_17] : memref<32x16xbf16, #tpu.memory_space<vmem>>, vector<32x16xbf16>
    %cst_18 = arith.constant dense<0.000000e+00> : vector<16x16xf32>
    %31 = tpu.matmul %25, %30, %cst_18 {dimension_numbers = #tpu.dot_dimension_numbers<[1], [0], [0], [1], [0, 0, 1, 1], [], []>} : vector<16x32xbf16>, vector<32x16xbf16>, vector<16x16xf32> -> vector<16x16xf32>
    %c0_19 = arith.constant 0 : index
    %c0_20 = arith.constant 0 : index
    %32 = vector.load %arg7[%c0_19, %c0_20] : memref<1x32xf32, #tpu.memory_space<vmem>>, vector<1x32xf32>
    %c0_21 = arith.constant 0 : index
    %c0_22 = arith.constant 0 : index
    %33 = vector.load %arg8[%c0_21, %c0_22] : memref<1x32xf32, #tpu.memory_space<vmem>>, vector<1x32xf32>
    %cst_23 = arith.constant dense<0.000000e+00> : vector<16xf32>
    %34 = vector.multi_reduction <add>, %27, %cst_23 [1] : vector<16x32xf32> to vector<16xf32>
    %35 = vector.shape_cast %34 : vector<16xf32> to vector<16x1xf32>
    %cst_24 = arith.constant 3.200000e+01 : f32
    %36 = vector.broadcast %cst_24 : f32 to vector<16x1xf32>
    %37 = arith.divf %35, %36 : vector<16x1xf32>
    %38 = vector.broadcast %37 : vector<16x1xf32> to vector<16x32xf32>
    %39 = arith.subf %27, %38 : vector<16x32xf32>
    %40 = vector.broadcast %37 : vector<16x1xf32> to vector<16x32xf32>
    %41 = arith.subf %27, %40 : vector<16x32xf32>
    %42 = arith.mulf %39, %41 : vector<16x32xf32>
    %cst_25 = arith.constant dense<0.000000e+00> : vector<16xf32>
    %43 = vector.multi_reduction <add>, %42, %cst_25 [1] : vector<16x32xf32> to vector<16xf32>
    %44 = vector.shape_cast %43 : vector<16xf32> to vector<16x1xf32>
    %cst_26 = arith.constant 3.200000e+01 : f32
    %45 = vector.broadcast %cst_26 : f32 to vector<16x1xf32>
    %46 = arith.divf %44, %45 : vector<16x1xf32>
    %47 = vector.broadcast %37 : vector<16x1xf32> to vector<16x32xf32>
    %48 = arith.subf %27, %47 : vector<16x32xf32>
    %cst_27 = arith.constant 9.99999974E-6 : f32
    %49 = vector.broadcast %cst_27 : f32 to vector<16x1xf32>
    %50 = arith.addf %46, %49 : vector<16x1xf32>
    %51 = math.rsqrt %50 : vector<16x1xf32>
    %52 = vector.broadcast %51 : vector<16x1xf32> to vector<16x32xf32>
    %53 = arith.mulf %48, %52 : vector<16x32xf32>
    %54 = vector.broadcast %32 : vector<1x32xf32> to vector<16x32xf32>
    %55 = arith.mulf %53, %54 : vector<16x32xf32>
    %56 = vector.broadcast %33 : vector<1x32xf32> to vector<16x32xf32>
    %57 = arith.addf %55, %56 : vector<16x32xf32>
    %c0_28 = arith.constant 0 : index
    %c0_29 = arith.constant 0 : index
    %58 = vector.load %arg9[%c0_28, %c0_29] : memref<1x16xf32, #tpu.memory_space<vmem>>, vector<1x16xf32>
    %c0_30 = arith.constant 0 : index
    %c0_31 = arith.constant 0 : index
    %59 = vector.load %arg10[%c0_30, %c0_31] : memref<1x16xf32, #tpu.memory_space<vmem>>, vector<1x16xf32>
    %cst_32 = arith.constant dense<0.000000e+00> : vector<16xf32>
    %60 = vector.multi_reduction <add>, %29, %cst_32 [1] : vector<16x16xf32> to vector<16xf32>
    %61 = vector.shape_cast %60 : vector<16xf32> to vector<16x1xf32>
    %cst_33 = arith.constant 1.600000e+01 : f32
    %62 = vector.broadcast %cst_33 : f32 to vector<16x1xf32>
    %63 = arith.divf %61, %62 : vector<16x1xf32>
    %64 = vector.broadcast %63 : vector<16x1xf32> to vector<16x16xf32>
    %65 = arith.subf %29, %64 : vector<16x16xf32>
    %66 = vector.broadcast %63 : vector<16x1xf32> to vector<16x16xf32>
    %67 = arith.subf %29, %66 : vector<16x16xf32>
    %68 = arith.mulf %65, %67 : vector<16x16xf32>
    %cst_34 = arith.constant dense<0.000000e+00> : vector<16xf32>
    %69 = vector.multi_reduction <add>, %68, %cst_34 [1] : vector<16x16xf32> to vector<16xf32>
    %70 = vector.shape_cast %69 : vector<16xf32> to vector<16x1xf32>
    %cst_35 = arith.constant 1.600000e+01 : f32
    %71 = vector.broadcast %cst_35 : f32 to vector<16x1xf32>
    %72 = arith.divf %70, %71 : vector<16x1xf32>
    %73 = vector.broadcast %63 : vector<16x1xf32> to vector<16x16xf32>
    %74 = arith.subf %29, %73 : vector<16x16xf32>
    %cst_36 = arith.constant 9.99999974E-6 : f32
    %75 = vector.broadcast %cst_36 : f32 to vector<16x1xf32>
    %76 = arith.addf %72, %75 : vector<16x1xf32>
    %77 = math.rsqrt %76 : vector<16x1xf32>
    %78 = vector.broadcast %77 : vector<16x1xf32> to vector<16x16xf32>
    %79 = arith.mulf %74, %78 : vector<16x16xf32>
    %80 = vector.broadcast %58 : vector<1x16xf32> to vector<16x16xf32>
    %81 = arith.mulf %79, %80 : vector<16x16xf32>
    %82 = vector.broadcast %59 : vector<1x16xf32> to vector<16x16xf32>
    %83 = arith.addf %81, %82 : vector<16x16xf32>
    %c0_37 = arith.constant 0 : index
    %c0_38 = arith.constant 0 : index
    %84 = vector.load %arg4[%c0_37, %c0_38] : memref<16x4xf32, #tpu.memory_space<vmem>>, vector<16x4xf32>
    %c0_39 = arith.constant 0 : index
    %c0_40 = arith.constant 0 : index
    %85 = vector.load %arg5[%c0_39, %c0_40] : memref<16x4xf32, #tpu.memory_space<vmem>>, vector<16x4xf32>
    %86 = vector.extract_strided_slice %57 {offsets = [0, 0], sizes = [16, 4], strides = [1, 1]} : vector<16x32xf32> to vector<16x4xf32>
    %87 = vector.extract_strided_slice %57 {offsets = [0, 4], sizes = [16, 4], strides = [1, 1]} : vector<16x32xf32> to vector<16x4xf32>
    %88 = arith.mulf %86, %84 : vector<16x4xf32>
    %89 = arith.mulf %87, %85 : vector<16x4xf32>
    %90 = arith.subf %88, %89 : vector<16x4xf32>
    %91 = arith.mulf %87, %84 : vector<16x4xf32>
    %92 = arith.mulf %86, %85 : vector<16x4xf32>
    %93 = arith.addf %91, %92 : vector<16x4xf32>
    %94 = vector.extract_strided_slice %57 {offsets = [0, 8], sizes = [16, 4], strides = [1, 1]} : vector<16x32xf32> to vector<16x4xf32>
    %95 = vector.extract_strided_slice %57 {offsets = [0, 12], sizes = [16, 4], strides = [1, 1]} : vector<16x32xf32> to vector<16x4xf32>
    %96 = arith.mulf %94, %84 : vector<16x4xf32>
    %97 = arith.mulf %95, %85 : vector<16x4xf32>
    %98 = arith.subf %96, %97 : vector<16x4xf32>
    %99 = arith.mulf %95, %84 : vector<16x4xf32>
    %100 = arith.mulf %94, %85 : vector<16x4xf32>
    %101 = arith.addf %99, %100 : vector<16x4xf32>
    %102 = vector.extract_strided_slice %57 {offsets = [0, 16], sizes = [16, 4], strides = [1, 1]} : vector<16x32xf32> to vector<16x4xf32>
    %103 = vector.extract_strided_slice %57 {offsets = [0, 20], sizes = [16, 4], strides = [1, 1]} : vector<16x32xf32> to vector<16x4xf32>
    %104 = arith.mulf %102, %84 : vector<16x4xf32>
    %105 = arith.mulf %103, %85 : vector<16x4xf32>
    %106 = arith.subf %104, %105 : vector<16x4xf32>
    %107 = arith.mulf %103, %84 : vector<16x4xf32>
    %108 = arith.mulf %102, %85 : vector<16x4xf32>
    %109 = arith.addf %107, %108 : vector<16x4xf32>
    %110 = vector.extract_strided_slice %57 {offsets = [0, 24], sizes = [16, 4], strides = [1, 1]} : vector<16x32xf32> to vector<16x4xf32>
    %111 = vector.extract_strided_slice %57 {offsets = [0, 28], sizes = [16, 4], strides = [1, 1]} : vector<16x32xf32> to vector<16x4xf32>
    %112 = arith.mulf %110, %84 : vector<16x4xf32>
    %113 = arith.mulf %111, %85 : vector<16x4xf32>
    %114 = arith.subf %112, %113 : vector<16x4xf32>
    %115 = arith.mulf %111, %84 : vector<16x4xf32>
    %116 = arith.mulf %110, %85 : vector<16x4xf32>
    %117 = arith.addf %115, %116 : vector<16x4xf32>
    %118 = tpu.concatenate %90, %93, %98, %101, %106, %109, %114, %117 in 1 : vector<16x4xf32>, vector<16x4xf32>, vector<16x4xf32>, vector<16x4xf32>, vector<16x4xf32>, vector<16x4xf32>, vector<16x4xf32>, vector<16x4xf32> -> vector<16x32xf32>
    %119 = arith.truncf %118 : vector<16x32xf32> to vector<16x32xbf16>
    %c0_41 = arith.constant 0 : index
    %c0_42 = arith.constant 0 : index
    %c0_43 = arith.constant 0 : index
    %120 = vector.load %arg14[%c0_41, %c0_42, %c0_43] : memref<1x16x32xbf16, #tpu.memory_space<vmem>>, vector<1x16x32xbf16>
    %121 = vector.shape_cast %120 : vector<1x16x32xbf16> to vector<16x32xbf16>
    %122 = vector.shape_cast %119 : vector<16x32xbf16> to vector<1x16x32xbf16>
    tpu.vector_store %arg14[%c0_41, %c0_42, %c0_43], %122 {strides = array<i32>} : memref<1x16x32xbf16, #tpu.memory_space<vmem>>, vector<1x16x32xbf16>,
    %123 = vector.extract_strided_slice %83 {offsets = [0, 0], sizes = [16, 4], strides = [1, 1]} : vector<16x16xf32> to vector<16x4xf32>
    %124 = vector.extract_strided_slice %83 {offsets = [0, 4], sizes = [16, 4], strides = [1, 1]} : vector<16x16xf32> to vector<16x4xf32>
    %125 = arith.mulf %123, %84 : vector<16x4xf32>
    %126 = arith.mulf %124, %85 : vector<16x4xf32>
    %127 = arith.subf %125, %126 : vector<16x4xf32>
    %128 = arith.mulf %124, %84 : vector<16x4xf32>
    %129 = arith.mulf %123, %85 : vector<16x4xf32>
    %130 = arith.addf %128, %129 : vector<16x4xf32>
    %131 = vector.extract_strided_slice %83 {offsets = [0, 8], sizes = [16, 4], strides = [1, 1]} : vector<16x16xf32> to vector<16x4xf32>
    %132 = vector.extract_strided_slice %83 {offsets = [0, 12], sizes = [16, 4], strides = [1, 1]} : vector<16x16xf32> to vector<16x4xf32>
    %133 = arith.mulf %131, %84 : vector<16x4xf32>
    %134 = arith.mulf %132, %85 : vector<16x4xf32>
    %135 = arith.subf %133, %134 : vector<16x4xf32>
    %136 = arith.mulf %132, %84 : vector<16x4xf32>
    %137 = arith.mulf %131, %85 : vector<16x4xf32>
    %138 = arith.addf %136, %137 : vector<16x4xf32>
    %139 = tpu.concatenate %127, %130, %135, %138 in 1 : vector<16x4xf32>, vector<16x4xf32>, vector<16x4xf32>, vector<16x4xf32> -> vector<16x16xf32>
    %140 = arith.truncf %139 : vector<16x16xf32> to vector<16x16xbf16>
    %c0_44 = arith.constant 0 : index
    %c0_45 = arith.constant 0 : index
    %c0_46 = arith.constant 0 : index
    %141 = vector.load %arg15[%c0_44, %c0_45, %c0_46] : memref<1x16x16xbf16, #tpu.memory_space<vmem>>, vector<1x16x16xbf16>
    %142 = vector.shape_cast %141 : vector<1x16x16xbf16> to vector<16x16xbf16>
    %143 = vector.shape_cast %140 : vector<16x16xbf16> to vector<1x16x16xbf16>
    tpu.vector_store %arg15[%c0_44, %c0_45, %c0_46], %143 {strides = array<i32>} : memref<1x16x16xbf16, #tpu.memory_space<vmem>>, vector<1x16x16xbf16>,
    %144 = arith.truncf %31 : vector<16x16xf32> to vector<16x16xbf16>
    %c0_47 = arith.constant 0 : index
    %c0_48 = arith.constant 0 : index
    %c0_49 = arith.constant 0 : index
    %145 = vector.load %arg16[%c0_47, %c0_48, %c0_49] : memref<1x16x16xbf16, #tpu.memory_space<vmem>>, vector<1x16x16xbf16>
    %146 = vector.shape_cast %145 : vector<1x16x16xbf16> to vector<16x16xbf16>
    %147 = vector.shape_cast %144 : vector<16x16xbf16> to vector<1x16x16xbf16>
    tpu.vector_store %arg16[%c0_47, %c0_48, %c0_49], %147 {strides = array<i32>} : memref<1x16x16xbf16, #tpu.memory_space<vmem>>, vector<1x16x16xbf16>,
    return
  }
  func.func @transform_0(%arg0: i32, %arg1: i32) -> (i32, i32, i32) {
    %c0_i32 = arith.constant 0 : i32
    %c0_i32_0 = arith.constant 0 : i32
    return %arg0, %arg1, %c0_i32 : i32, i32, i32
  }
  func.func @transform_1(%arg0: i32, %arg1: i32) -> (i32, i32, i32) {
    %c0_i32 = arith.constant 0 : i32
    %c0_i32_0 = arith.constant 0 : i32
    %c0_i32_1 = arith.constant 0 : i32
    return %arg0, %c0_i32, %c0_i32_0 : i32, i32, i32
  }
  func.func @transform_2(%arg0: i32, %arg1: i32) -> (i32, i32) {
    %c0_i32 = arith.constant 0 : i32
    %c0_i32_0 = arith.constant 0 : i32
    return %arg1, %c0_i32 : i32, i32
  }
  func.func @transform_3(%arg0: i32, %arg1: i32) -> (i32, i32) {
    %c0_i32 = arith.constant 0 : i32
    %c0_i32_0 = arith.constant 0 : i32
    return %arg1, %c0_i32 : i32, i32
  }
  func.func @transform_4(%arg0: i32, %arg1: i32) -> (i32, i32) {
    %c0_i32 = arith.constant 0 : i32
    %c0_i32_0 = arith.constant 0 : i32
    %c0_i32_1 = arith.constant 0 : i32
    return %c0_i32, %c0_i32_0 : i32, i32
  }
  func.func @transform_5(%arg0: i32, %arg1: i32) -> (i32, i32) {
    %c0_i32 = arith.constant 0 : i32
    %c0_i32_0 = arith.constant 0 : i32
    %c0_i32_1 = arith.constant 0 : i32
    return %c0_i32, %c0_i32_0 : i32, i32
  }
  func.func @transform_6(%arg0: i32, %arg1: i32) -> (i32, i32) {
    %c0_i32 = arith.constant 0 : i32
    %c0_i32_0 = arith.constant 0 : i32
    %c0_i32_1 = arith.constant 0 : i32
    return %c0_i32, %c0_i32_0 : i32, i32
  }
  func.func @transform_7(%arg0: i32, %arg1: i32) -> (i32, i32) {
    %c0_i32 = arith.constant 0 : i32
    %c0_i32_0 = arith.constant 0 : i32
    %c0_i32_1 = arith.constant 0 : i32
    return %c0_i32, %c0_i32_0 : i32, i32
  }
  func.func @transform_8(%arg0: i32, %arg1: i32) -> (i32, i32) {
    %c0_i32 = arith.constant 0 : i32
    %c0_i32_0 = arith.constant 0 : i32
    %c0_i32_1 = arith.constant 0 : i32
    return %c0_i32, %c0_i32_0 : i32, i32
  }
  func.func @transform_9(%arg0: i32, %arg1: i32) -> (i32, i32) {
    %c0_i32 = arith.constant 0 : i32
    %c0_i32_0 = arith.constant 0 : i32
    %c0_i32_1 = arith.constant 0 : i32
    return %c0_i32, %c0_i32_0 : i32, i32
  }
  func.func @transform_10(%arg0: i32, %arg1: i32) -> (i32, i32) {
    %c0_i32 = arith.constant 0 : i32
    %c0_i32_0 = arith.constant 0 : i32
    %c0_i32_1 = arith.constant 0 : i32
    return %c0_i32, %c0_i32_0 : i32, i32
  }
  func.func @transform_11(%arg0: i32, %arg1: i32) -> (i32, i32) {
    %c0_i32 = arith.constant 0 : i32
    %c0_i32_0 = arith.constant 0 : i32
    %c0_i32_1 = arith.constant 0 : i32
    return %c0_i32, %c0_i32_0 : i32, i32
  }
  func.func @transform_12(%arg0: i32, %arg1: i32) -> (i32, i32, i32) {
    %c0_i32 = arith.constant 0 : i32
    %c0_i32_0 = arith.constant 0 : i32
    return %arg0, %arg1, %c0_i32 : i32, i32, i32
  }
  func.func @transform_13(%arg0: i32, %arg1: i32) -> (i32, i32, i32) {
    %c0_i32 = arith.constant 0 : i32
    %c0_i32_0 = arith.constant 0 : i32
    return %arg0, %arg1, %c0_i32 : i32, i32, i32
  }
  func.func @transform_14(%arg0: i32, %arg1: i32) -> (i32, i32, i32) {
    %c0_i32 = arith.constant 0 : i32
    %c0_i32_0 = arith.constant 0 : i32
    return %arg0, %arg1, %c0_i32 : i32, i32, i32
  }
}

</mosaic_0001>

<llo_original>
// kernel: tpu_custom_call.1
$region0: #{tpu_custom_call.1}
  #allocation0 [shape = 'u32[]', space=smem, size = 0x4, offset = 0x4, fixed_abs, tag = 'smem constant byte address 0x4 - core index']
  #allocation1 [shape = 'u32[72,128]{1,0:T(1,128)}', space=vmem, size = 0x9000, scoped, tag = 'internal scratch']
  %s0 = inlined_call_operand.vmem [shape: f32[2,16,32], index: 0, kind: input, shape index: {}]
  %s1 = inlined_call_operand.vmem [shape: f32[2,6,32], index: 1, kind: input, shape index: {}]
  %s2 = inlined_call_operand.vmem [shape: f32[16,4], index: 2, kind: input, shape index: {}]
  %s3 = inlined_call_operand.vmem [shape: f32[16,4], index: 3, kind: input, shape index: {}]
  %s4 = inlined_call_operand.vmem [shape: f32[1,32], index: 4, kind: input, shape index: {}]
  %s5 = inlined_call_operand.vmem [shape: f32[1,32], index: 5, kind: input, shape index: {}]
  %s6 = inlined_call_operand.vmem [shape: f32[1,32], index: 6, kind: input, shape index: {}]
  %s7 = inlined_call_operand.vmem [shape: f32[1,16], index: 7, kind: input, shape index: {}]
  %s8 = inlined_call_operand.vmem [shape: f32[1,16], index: 8, kind: input, shape index: {}]
  %s9 = inlined_call_operand.vmem [shape: bf16[32,32], index: 9, kind: input, shape index: {}]
  %s10 = inlined_call_operand.vmem [shape: bf16[32,16], index: 10, kind: input, shape index: {}]
  %s11 = inlined_call_operand.vmem [shape: bf16[32,16], index: 11, kind: input, shape index: {}]
  %s12 = inlined_call_operand.hbm [shape: bf16[2,16,32], index: 12, kind: output, shape index: {0}]
  %s13 = inlined_call_operand.hbm [shape: bf16[2,16,16], index: 13, kind: output, shape index: {1}]
  %s14 = inlined_call_operand.hbm [shape: bf16[2,16,16], index: 14, kind: output, shape index: {2}]
  %15 = xla_tuple %s12, %s13, %s14
  %s16 = sld [smem:[#allocation0]]
  $region97: #{tpu_custom_call.1} parent=0
    _
  %s18 = ssub.s32 1, %s16
  %s19 = scalar_select 0, %s18, %s16
  $region1: #{tpu_custom_call.1} parent=0
    #allocation2 [shape = 'u8[8192]{0}', space=vmem, size = 0x2000, scoped, tag = 'output window, operand 0']
    #allocation3 [shape = 's32[2]{0}', space=sflag, size = 0x8, scoped, tag = 'scoped memory for tpu_custom_call.1']
    #allocation4 [shape = 'u8[8192]{0}', space=vmem, size = 0x2000, scoped, tag = 'output window, operand 1']
    #allocation5 [shape = 's32[2]{0}', space=sflag, size = 0x8, scoped, tag = 'scoped memory for tpu_custom_call.1']
    #allocation6 [shape = 'u8[8192]{0}', space=vmem, size = 0x2000, scoped, tag = 'output window, operand 2']
    %20 = vsyncpa [#allocation3], 0
    %s21 = scalar_lea.sflag [#allocation3], 1
    %22 = vsyncpa %s21, 0
    %23 = vsyncpa [#allocation5], 0
    %s24 = scalar_lea.sflag [#allocation5], 1
    %25 = vsyncpa %s24, 0
    loop: start=0, step=1, limit=4
    $region2: #{tpu_custom_call.1} parent=1 // loop_pre_header
      _
    $region3: #{tpu_custom_call.1} parent=1 // loop_header
      %s27 = sphi 0, %s31
      %p28 = scmp.ge.s32.totalorder %s27, 4
      %s34 = sphi 0, %s46
      %s35 = sphi 0, %s42
      %s36 = sphi 0, %s34
      %s37 = sphi 0, %s35
      %s38 = sphi 0, %s36
      %s39 = sphi 0, %s37
      %s51 = sphi 0, %s53
      %s54 = sphi 0, %s51
      %s55 = sphi 0, %s54
      %s71 = sphi 0, %s55
      %s77 = sphi 0, %s79
      %s80 = sphi 0, %s77
      %s81 = sphi 0, %s80
      %s97 = sphi 0, %s81
      %s103 = sphi 0, %s105
      %s106 = sphi 0, %s103
      %s107 = sphi 0, %s106
      %s123 = sphi 0, %s107
      %s129 = sphi 0, %s131
      %s132 = sphi 0, %s129
      %s133 = sphi 0, %s132
      %s149 = sphi 0, %s133
      %s153 = sphi 0, %s153
      %s155 = sphi 0, %s153
      %s156 = sphi 0, %s155
      %s170 = sphi 0, %s156
      %s174 = sphi 0, %s174
      %s176 = sphi 0, %s174
      %s177 = sphi 0, %s176
      %s191 = sphi 0, %s177
      %s195 = sphi 0, %s195
      %s197 = sphi 0, %s195
      %s198 = sphi 0, %s197
      %s212 = sphi 0, %s198
      %s216 = sphi 0, %s216
      %s218 = sphi 0, %s216
      %s219 = sphi 0, %s218
      %s233 = sphi 0, %s219
      %s237 = sphi 0, %s237
      %s239 = sphi 0, %s237
      %s240 = sphi 0, %s239
      %s254 = sphi 0, %s240
      %s258 = sphi 0, %s258
      %s260 = sphi 0, %s258
      %s261 = sphi 0, %s260
      %s275 = sphi 0, %s261
      %s279 = sphi 0, %s279
      %s281 = sphi 0, %s279
      %s282 = sphi 0, %s281
      %s296 = sphi 0, %s282
      %s300 = sphi 0, %s300
      %s302 = sphi 0, %s300
      %s303 = sphi 0, %s302
      %s317 = sphi 0, %s303
      %s325 = sphi 0, %s327
      %s328 = sphi 0, %s325
      %s329 = sphi 0, %s328
      %s345 = sphi 0, %s329
      %s353 = sphi 0, %s355
      %s356 = sphi 0, %s353
      %s357 = sphi 0, %s356
      %s373 = sphi 0, %s357
      %s381 = sphi 0, %s383
      %s384 = sphi 0, %s381
      %s385 = sphi 0, %s384
      %s401 = sphi 0, %s385
    $region4: #{tpu_custom_call.1} parent=1 // loop_header_branch
      %30 = sbr.rel (%p28) target = $region8
    $region5: #{tpu_custom_call.1} parent=1 // loop_body
      %s32 = ssub.s32 %s27, 1
      %s33 = ssub.s32 %s27, 2
      %s40 = sadd.s32 1, %s35
      %p41 = scmp.ge.s32.totalorder %s40, 1
      %s42 = scalar_select %p41, 0, %s40
      %s43 = sadd.s32 1, %s34
      %s44 = scalar_select %p41, %s43, %s34
      %p45 = scmp.ge.s32.totalorder %s44, 2
      %s46 = scalar_select %p45, 0, %s44
      %s47 = ssub.s32 %s34, %s46
      %s48 = ssub.s32 %s35, %s42
      %s49 = sor.u32 %s47, %s48
      %p50 = scmp.eq.s32.totalorder %s49, 0
      %s52 = sadd.s32 %s51, 1
      %s53 = scalar_select %p50, %s51, %s52
      %p56 = pneg %p50
      %p57 = scmp.eq.s32.totalorder %s27, 1
      %p58 = por %p56, %p57
      %p59 = scmp.ne.s32.totalorder %s51, %s54
      %p60 = scmp.eq.s32.totalorder %s27, 0
      %p61 = por %p59, %p60
      %p62 = scmp.ne.s32.totalorder %s51, %s54
      %p63 = scmp.eq.s32.totalorder %s32, 1
      %p64 = por %p62, %p63
      %p65 = scmp.ne.s32.totalorder %s54, %s55
      %p66 = scmp.eq.s32.totalorder %s32, 0
      %p67 = por %p65, %p66
      %p68 = scmp.ne.s32.totalorder %s54, %s55
      %p69 = scmp.eq.s32.totalorder %s33, 1
      %p70 = por %p68, %p69
      %p72 = scmp.ne.s32.totalorder %s55, %s71
      %p73 = scmp.eq.s32.totalorder %s33, 0
      %p74 = por %p72, %p73
      %s75 = ssub.s32 %s34, %s46
      %p76 = scmp.eq.s32.totalorder %s75, 0
      %s78 = sadd.s32 %s77, 1
      %s79 = scalar_select %p76, %s77, %s78
      %p82 = pneg %p76
      %p83 = scmp.eq.s32.totalorder %s27, 1
      %p84 = por %p82, %p83
      %p85 = scmp.ne.s32.totalorder %s77, %s80
      %p86 = scmp.eq.s32.totalorder %s27, 0
      %p87 = por %p85, %p86
      %p88 = scmp.ne.s32.totalorder %s77, %s80
      %p89 = scmp.eq.s32.totalorder %s32, 1
      %p90 = por %p88, %p89
      %p91 = scmp.ne.s32.totalorder %s80, %s81
      %p92 = scmp.eq.s32.totalorder %s32, 0
      %p93 = por %p91, %p92
      %p94 = scmp.ne.s32.totalorder %s80, %s81
      %p95 = scmp.eq.s32.totalorder %s33, 1
      %p96 = por %p94, %p95
      %p98 = scmp.ne.s32.totalorder %s81, %s97
      %p99 = scmp.eq.s32.totalorder %s33, 0
      %p100 = por %p98, %p99
      %s101 = ssub.s32 %s35, %s42
      %p102 = scmp.eq.s32.totalorder %s101, 0
      %s104 = sadd.s32 %s103, 1
      %s105 = scalar_select %p102, %s103, %s104
      %p108 = pneg %p102
      %p109 = scmp.eq.s32.totalorder %s27, 1
      %p110 = por %p108, %p109
      %p111 = scmp.ne.s32.totalorder %s103, %s106
      %p112 = scmp.eq.s32.totalorder %s27, 0
      %p113 = por %p111, %p112
      %p114 = scmp.ne.s32.totalorder %s103, %s106
      %p115 = scmp.eq.s32.totalorder %s32, 1
      %p116 = por %p114, %p115
      %p117 = scmp.ne.s32.totalorder %s106, %s107
      %p118 = scmp.eq.s32.totalorder %s32, 0
      %p119 = por %p117, %p118
      %p120 = scmp.ne.s32.totalorder %s106, %s107
      %p121 = scmp.eq.s32.totalorder %s33, 1
      %p122 = por %p120, %p121
      %p124 = scmp.ne.s32.totalorder %s107, %s123
      %p125 = scmp.eq.s32.totalorder %s33, 0
      %p126 = por %p124, %p125
      %s127 = ssub.s32 %s35, %s42
      %p128 = scmp.eq.s32.totalorder %s127, 0
      %s130 = sadd.s32 %s129, 1
      %s131 = scalar_select %p128, %s129, %s130
      %p134 = pneg %p128
      %p135 = scmp.eq.s32.totalorder %s27, 1
      %p136 = por %p134, %p135
      %p137 = scmp.ne.s32.totalorder %s129, %s132
      %p138 = scmp.eq.s32.totalorder %s27, 0
      %p139 = por %p137, %p138
      %p140 = scmp.ne.s32.totalorder %s129, %s132
      %p141 = scmp.eq.s32.totalorder %s32, 1
      %p142 = por %p140, %p141
      %p143 = scmp.ne.s32.totalorder %s132, %s133
      %p144 = scmp.eq.s32.totalorder %s32, 0
      %p145 = por %p143, %p144
      %p146 = scmp.ne.s32.totalorder %s132, %s133
      %p147 = scmp.eq.s32.totalorder %s33, 1
      %p148 = por %p146, %p147
      %p150 = scmp.ne.s32.totalorder %s133, %s149
      %p151 = scmp.eq.s32.totalorder %s33, 0
      %p152 = por %p150, %p151
      %s154 = sadd.s32 %s153, 1
      %p157 = scmp.eq.s32.totalorder %s27, 1
      %p158 = scmp.ne.s32.totalorder %s153, %s155
      %p159 = scmp.eq.s32.totalorder %s27, 0
      %p160 = por %p158, %p159
      %p161 = scmp.ne.s32.totalorder %s153, %s155
      %p162 = scmp.eq.s32.totalorder %s32, 1
      %p163 = por %p161, %p162
      %p164 = scmp.ne.s32.totalorder %s155, %s156
      %p165 = scmp.eq.s32.totalorder %s32, 0
      %p166 = por %p164, %p165
      %p167 = scmp.ne.s32.totalorder %s155, %s156
      %p168 = scmp.eq.s32.totalorder %s33, 1
      %p169 = por %p167, %p168
      %p171 = scmp.ne.s32.totalorder %s156, %s170
      %p172 = scmp.eq.s32.totalorder %s33, 0
      %p173 = por %p171, %p172
      %s175 = sadd.s32 %s174, 1
      %p178 = scmp.eq.s32.totalorder %s27, 1
      %p179 = scmp.ne.s32.totalorder %s174, %s176
      %p180 = scmp.eq.s32.totalorder %s27, 0
      %p181 = por %p179, %p180
      %p182 = scmp.ne.s32.totalorder %s174, %s176
      %p183 = scmp.eq.s32.totalorder %s32, 1
      %p184 = por %p182, %p183
      %p185 = scmp.ne.s32.totalorder %s176, %s177
      %p186 = scmp.eq.s32.totalorder %s32, 0
      %p187 = por %p185, %p186
      %p188 = scmp.ne.s32.totalorder %s176, %s177
      %p189 = scmp.eq.s32.totalorder %s33, 1
      %p190 = por %p188, %p189
      %p192 = scmp.ne.s32.totalorder %s177, %s191
      %p193 = scmp.eq.s32.totalorder %s33, 0
      %p194 = por %p192, %p193
      %s196 = sadd.s32 %s195, 1
      %p199 = scmp.eq.s32.totalorder %s27, 1
      %p200 = scmp.ne.s32.totalorder %s195, %s197
      %p201 = scmp.eq.s32.totalorder %s27, 0
      %p202 = por %p200, %p201
      %p203 = scmp.ne.s32.totalorder %s195, %s197
      %p204 = scmp.eq.s32.totalorder %s32, 1
      %p205 = por %p203, %p204
      %p206 = scmp.ne.s32.totalorder %s197, %s198
      %p207 = scmp.eq.s32.totalorder %s32, 0
      %p208 = por %p206, %p207
      %p209 = scmp.ne.s32.totalorder %s197, %s198
      %p210 = scmp.eq.s32.totalorder %s33, 1
      %p211 = por %p209, %p210
      %p213 = scmp.ne.s32.totalorder %s198, %s212
      %p214 = scmp.eq.s32.totalorder %s33, 0
      %p215 = por %p213, %p214
      %s217 = sadd.s32 %s216, 1
      %p220 = scmp.eq.s32.totalorder %s27, 1
      %p221 = scmp.ne.s32.totalorder %s216, %s218
      %p222 = scmp.eq.s32.totalorder %s27, 0
      %p223 = por %p221, %p222
      %p224 = scmp.ne.s32.totalorder %s216, %s218
      %p225 = scmp.eq.s32.totalorder %s32, 1
      %p226 = por %p224, %p225
      %p227 = scmp.ne.s32.totalorder %s218, %s219
      %p228 = scmp.eq.s32.totalorder %s32, 0
      %p229 = por %p227, %p228
      %p230 = scmp.ne.s32.totalorder %s218, %s219
      %p231 = scmp.eq.s32.totalorder %s33, 1
      %p232 = por %p230, %p231
      %p234 = scmp.ne.s32.totalorder %s219, %s233
      %p235 = scmp.eq.s32.totalorder %s33, 0
      %p236 = por %p234, %p235
      %s238 = sadd.s32 %s237, 1
      %p241 = scmp.eq.s32.totalorder %s27, 1
      %p242 = scmp.ne.s32.totalorder %s237, %s239
      %p243 = scmp.eq.s32.totalorder %s27, 0
      %p244 = por %p242, %p243
      %p245 = scmp.ne.s32.totalorder %s237, %s239
      %p246 = scmp.eq.s32.totalorder %s32, 1
      %p247 = por %p245, %p246
      %p248 = scmp.ne.s32.totalorder %s239, %s240
      %p249 = scmp.eq.s32.totalorder %s32, 0
      %p250 = por %p248, %p249
      %p251 = scmp.ne.s32.totalorder %s239, %s240
      %p252 = scmp.eq.s32.totalorder %s33, 1
      %p253 = por %p251, %p252
      %p255 = scmp.ne.s32.totalorder %s240, %s254
      %p256 = scmp.eq.s32.totalorder %s33, 0
      %p257 = por %p255, %p256
      %s259 = sadd.s32 %s258, 1
      %p262 = scmp.eq.s32.totalorder %s27, 1
      %p263 = scmp.ne.s32.totalorder %s258, %s260
      %p264 = scmp.eq.s32.totalorder %s27, 0
      %p265 = por %p263, %p264
      %p266 = scmp.ne.s32.totalorder %s258, %s260
      %p267 = scmp.eq.s32.totalorder %s32, 1
      %p268 = por %p266, %p267
      %p269 = scmp.ne.s32.totalorder %s260, %s261
      %p270 = scmp.eq.s32.totalorder %s32, 0
      %p271 = por %p269, %p270
      %p272 = scmp.ne.s32.totalorder %s260, %s261
      %p273 = scmp.eq.s32.totalorder %s33, 1
      %p274 = por %p272, %p273
      %p276 = scmp.ne.s32.totalorder %s261, %s275
      %p277 = scmp.eq.s32.totalorder %s33, 0
      %p278 = por %p276, %p277
      %s280 = sadd.s32 %s279, 1
      %p283 = scmp.eq.s32.totalorder %s27, 1
      %p284 = scmp.ne.s32.totalorder %s279, %s281
      %p285 = scmp.eq.s32.totalorder %s27, 0
      %p286 = por %p284, %p285
      %p287 = scmp.ne.s32.totalorder %s279, %s281
      %p288 = scmp.eq.s32.totalorder %s32, 1
      %p289 = por %p287, %p288
      %p290 = scmp.ne.s32.totalorder %s281, %s282
      %p291 = scmp.eq.s32.totalorder %s32, 0
      %p292 = por %p290, %p291
      %p293 = scmp.ne.s32.totalorder %s281, %s282
      %p294 = scmp.eq.s32.totalorder %s33, 1
      %p295 = por %p293, %p294
      %p297 = scmp.ne.s32.totalorder %s282, %s296
      %p298 = scmp.eq.s32.totalorder %s33, 0
      %p299 = por %p297, %p298
      %s301 = sadd.s32 %s300, 1
      %p304 = scmp.eq.s32.totalorder %s27, 1
      %p305 = scmp.ne.s32.totalorder %s300, %s302
      %p306 = scmp.eq.s32.totalorder %s27, 0
      %p307 = por %p305, %p306
      %p308 = scmp.ne.s32.totalorder %s300, %s302
      %p309 = scmp.eq.s32.totalorder %s32, 1
      %p310 = por %p308, %p309
      %p311 = scmp.ne.s32.totalorder %s302, %s303
      %p312 = scmp.eq.s32.totalorder %s32, 0
      %p313 = por %p311, %p312
      %p314 = scmp.ne.s32.totalorder %s302, %s303
      %p315 = scmp.eq.s32.totalorder %s33, 1
      %p316 = por %p314, %p315
      %p318 = scmp.ne.s32.totalorder %s303, %s317
      %p319 = scmp.eq.s32.totalorder %s33, 0
      %p320 = por %p318, %p319
      %s321 = ssub.s32 %s34, %s46
      %s322 = ssub.s32 %s35, %s42
      %s323 = sor.u32 %s321, %s322
      %p324 = scmp.eq.s32.totalorder %s323, 0
      %s326 = sadd.s32 %s325, 1
      %s327 = scalar_select %p324, %s325, %s326
      %p330 = pneg %p324
      %p331 = scmp.eq.s32.totalorder %s27, 1
      %p332 = por %p330, %p331
      %p333 = scmp.ne.s32.totalorder %s325, %s328
      %p334 = scmp.eq.s32.totalorder %s27, 0
      %p335 = por %p333, %p334
      %p336 = scmp.ne.s32.totalorder %s325, %s328
      %p337 = scmp.eq.s32.totalorder %s32, 1
      %p338 = por %p336, %p337
      %p339 = scmp.ne.s32.totalorder %s328, %s329
      %p340 = scmp.eq.s32.totalorder %s32, 0
      %p341 = por %p339, %p340
      %p342 = scmp.ne.s32.totalorder %s328, %s329
      %p343 = scmp.eq.s32.totalorder %s33, 1
      %p344 = por %p342, %p343
      %p346 = scmp.ne.s32.totalorder %s329, %s345
      %p347 = scmp.eq.s32.totalorder %s33, 0
      %p348 = por %p346, %p347
      %s349 = ssub.s32 %s34, %s46
      %s350 = ssub.s32 %s35, %s42
      %s351 = sor.u32 %s349, %s350
      %p352 = scmp.eq.s32.totalorder %s351, 0
      %s354 = sadd.s32 %s353, 1
      %s355 = scalar_select %p352, %s353, %s354
      %p358 = pneg %p352
      %p359 = scmp.eq.s32.totalorder %s27, 1
      %p360 = por %p358, %p359
      %p361 = scmp.ne.s32.totalorder %s353, %s356
      %p362 = scmp.eq.s32.totalorder %s27, 0
      %p363 = por %p361, %p362
      %p364 = scmp.ne.s32.totalorder %s353, %s356
      %p365 = scmp.eq.s32.totalorder %s32, 1
      %p366 = por %p364, %p365
      %p367 = scmp.ne.s32.totalorder %s356, %s357
      %p368 = scmp.eq.s32.totalorder %s32, 0
      %p369 = por %p367, %p368
      %p370 = scmp.ne.s32.totalorder %s356, %s357
      %p371 = scmp.eq.s32.totalorder %s33, 1
      %p372 = por %p370, %p371
      %p374 = scmp.ne.s32.totalorder %s357, %s373
      %p375 = scmp.eq.s32.totalorder %s33, 0
      %p376 = por %p374, %p375
      %s377 = ssub.s32 %s34, %s46
      %s378 = ssub.s32 %s35, %s42
      %s379 = sor.u32 %s377, %s378
      %p380 = scmp.eq.s32.totalorder %s379, 0
      %s382 = sadd.s32 %s381, 1
      %s383 = scalar_select %p380, %s381, %s382
      %p386 = pneg %p380
      %p387 = scmp.eq.s32.totalorder %s27, 1
      %p388 = por %p386, %p387
      %p389 = scmp.ne.s32.totalorder %s381, %s384
      %p390 = scmp.eq.s32.totalorder %s27, 0
      %p391 = por %p389, %p390
      %p392 = scmp.ne.s32.totalorder %s381, %s384
      %p393 = scmp.eq.s32.totalorder %s32, 1
      %p394 = por %p392, %p393
      %p395 = scmp.ne.s32.totalorder %s384, %s385
      %p396 = scmp.eq.s32.totalorder %s32, 0
      %p397 = por %p395, %p396
      %p398 = scmp.ne.s32.totalorder %s384, %s385
      %p399 = scmp.eq.s32.totalorder %s33, 1
      %p400 = por %p398, %p399
      %p402 = scmp.ne.s32.totalorder %s385, %s401
      %p403 = scmp.eq.s32.totalorder %s33, 0
      %p404 = por %p402, %p403
      %p405 = scmp.le.s32.totalorder 1, %s27
      %p406 = scmp.lt.s32.totalorder %s27, 3
      %p407 = pnand %p405, %p406
      %p408 = pneg %p407
      // Predicated region
      $region9: #{tpu_custom_call.1} parent=5 // pred_check
        _
      $region10: #{tpu_custom_call.1} parent=5 // pred_check_branch
        %410 = sbr.rel (%p407) target = $region12
      $region11: #{tpu_custom_call.1} parent=5 // pred_region
        %s411 = ssub.s32 %s27, 1
        // Predicated region
        $region13: #{tpu_custom_call.1} parent=11 // pred_check
          %p412 = pneg %p119
        $region14: #{tpu_custom_call.1} parent=11 // pred_check_branch
          %414 = sbr.rel (%p412) target = $region16
        $region15: #{tpu_custom_call.1} parent=11 // pred_region
          %s415 = smul.u32 2, %s37
          %p416 = scmp.lt.s32.totalorder %s415, 1
          %s417 = scalar_select %p416, %s415, 1
          %s418 = smul.addr %s417, 8
          %s419 = scalar_lea.vmem %s2, %s418
          %s420 = smul.u32 2, %s37
        $region16: #{tpu_custom_call.1} parent=11 // pred_fallthru
          _
        // Predicated region
        $region17: #{tpu_custom_call.1} parent=11 // pred_check
          %p421 = pneg %p145
        $region18: #{tpu_custom_call.1} parent=11 // pred_check_branch
          %423 = sbr.rel (%p421) target = $region20
        $region19: #{tpu_custom_call.1} parent=11 // pred_region
          %s424 = smul.u32 2, %s37
          %p425 = scmp.lt.s32.totalorder %s424, 1
          %s426 = scalar_select %p425, %s424, 1
          %s427 = smul.addr %s426, 8
          %s428 = scalar_lea.vmem %s3, %s427
          %s429 = smul.u32 2, %s37
        $region20: #{tpu_custom_call.1} parent=11 // pred_fallthru
          _
        // Predicated region
        $region21: #{tpu_custom_call.1} parent=11 // pred_check
          %p430 = pneg %p166
        $region22: #{tpu_custom_call.1} parent=11 // pred_check_branch
          %432 = sbr.rel (%p430) target = $region24
        $region23: #{tpu_custom_call.1} parent=11 // pred_region
          _
        $region24: #{tpu_custom_call.1} parent=11 // pred_fallthru
          _
        // Predicated region
        $region25: #{tpu_custom_call.1} parent=11 // pred_check
          %p433 = pneg %p187
        $region26: #{tpu_custom_call.1} parent=11 // pred_check_branch
          %435 = sbr.rel (%p433) target = $region28
        $region27: #{tpu_custom_call.1} parent=11 // pred_region
          _
        $region28: #{tpu_custom_call.1} parent=11 // pred_fallthru
          _
        // Predicated region
        $region29: #{tpu_custom_call.1} parent=11 // pred_check
          %p436 = pneg %p208
        $region30: #{tpu_custom_call.1} parent=11 // pred_check_branch
          %438 = sbr.rel (%p436) target = $region32
        $region31: #{tpu_custom_call.1} parent=11 // pred_region
          _
        $region32: #{tpu_custom_call.1} parent=11 // pred_fallthru
          _
        // Predicated region
        $region33: #{tpu_custom_call.1} parent=11 // pred_check
          %p439 = pneg %p229
        $region34: #{tpu_custom_call.1} parent=11 // pred_check_branch
          %441 = sbr.rel (%p439) target = $region36
        $region35: #{tpu_custom_call.1} parent=11 // pred_region
          _
        $region36: #{tpu_custom_call.1} parent=11 // pred_fallthru
          _
        // Predicated region
        $region37: #{tpu_custom_call.1} parent=11 // pred_check
          %p442 = pneg %p250
        $region38: #{tpu_custom_call.1} parent=11 // pred_check_branch
          %444 = sbr.rel (%p442) target = $region40
        $region39: #{tpu_custom_call.1} parent=11 // pred_region
          _
        $region40: #{tpu_custom_call.1} parent=11 // pred_fallthru
          _
        // Predicated region
        $region41: #{tpu_custom_call.1} parent=11 // pred_check
          %p445 = pneg %p271
        $region42: #{tpu_custom_call.1} parent=11 // pred_check_branch
          %447 = sbr.rel (%p445) target = $region44
        $region43: #{tpu_custom_call.1} parent=11 // pred_region
          _
        $region44: #{tpu_custom_call.1} parent=11 // pred_fallthru
          _
        // Predicated region
        $region45: #{tpu_custom_call.1} parent=11 // pred_check
          %p448 = pneg %p292
        $region46: #{tpu_custom_call.1} parent=11 // pred_check_branch
          %450 = sbr.rel (%p448) target = $region48
        $region47: #{tpu_custom_call.1} parent=11 // pred_region
          _
        $region48: #{tpu_custom_call.1} parent=11 // pred_fallthru
          _
        // Predicated region
        $region49: #{tpu_custom_call.1} parent=11 // pred_check
          %p451 = pneg %p313
        $region50: #{tpu_custom_call.1} parent=11 // pred_check_branch
          %453 = sbr.rel (%p451) target = $region52
        $region51: #{tpu_custom_call.1} parent=11 // pred_region
          _
        $region52: #{tpu_custom_call.1} parent=11 // pred_fallthru
          _
      $region12: #{tpu_custom_call.1} parent=5 // pred_fallthru
        _
      %p454 = scmp.lt.s32.totalorder %s27, 2
      // Predicated region
      $region53: #{tpu_custom_call.1} parent=5 // pred_check
        %p455 = pneg %p454
      $region54: #{tpu_custom_call.1} parent=5 // pred_check_branch
        %457 = sbr.rel (%p455) target = $region56
      $region55: #{tpu_custom_call.1} parent=5 // pred_region
        // Predicated region
        $region57: #{tpu_custom_call.1} parent=55 // pred_check
          %p458 = pneg %p61
        $region58: #{tpu_custom_call.1} parent=55 // pred_check_branch
          %460 = sbr.rel (%p458) target = $region60
        $region59: #{tpu_custom_call.1} parent=55 // pred_region
          %s461 = smul.u32 2, %s35
          %p462 = scmp.lt.s32.totalorder %s34, 1
          %s463 = scalar_select %p462, %s34, 1
          %p464 = scmp.lt.s32.totalorder %s461, 1
          %s465 = scalar_select %p464, %s461, 1
          %s466 = smul.addr %s463, 2
          %s467 = sadd.s32 %s465, %s466
          %s468 = smul.addr %s467, 8
          %s469 = scalar_lea.vmem %s0, %s468
          %s470 = smul.u32 2, %s35
        $region60: #{tpu_custom_call.1} parent=55 // pred_fallthru
          _
        // Predicated region
        $region61: #{tpu_custom_call.1} parent=55 // pred_check
          %p471 = pneg %p87
        $region62: #{tpu_custom_call.1} parent=55 // pred_check_branch
          %473 = sbr.rel (%p471) target = $region64
        $region63: #{tpu_custom_call.1} parent=55 // pred_region
          %p474 = scmp.lt.s32.totalorder %s34, 1
          %s475 = scalar_select %p474, %s34, 1
          %s476 = smul.addr %s475, 8
          %s477 = scalar_lea.vmem %s1, %s476
        $region64: #{tpu_custom_call.1} parent=55 // pred_fallthru
          _
      $region56: #{tpu_custom_call.1} parent=5 // pred_fallthru
        _
      %p478 = scmp.le.s32.totalorder 1, %s27
      %p479 = scmp.lt.s32.totalorder %s27, 3
      %p480 = pnand %p478, %p479
      %p481 = pneg %p480
      // Predicated region
      $region65: #{tpu_custom_call.1} parent=5 // pred_check
        _
      $region66: #{tpu_custom_call.1} parent=5 // pred_check_branch
        %483 = sbr.rel (%p480) target = $region68
      $region67: #{tpu_custom_call.1} parent=5 // pred_region
        %s484 = ssub.s32 %s27, 1
        %s485 = smul.u32 2, %s37
        %p486 = scmp.lt.s32.totalorder %s36, 1
        %s487 = scalar_select %p486, %s36, 1
        %p488 = scmp.lt.s32.totalorder %s485, 1
        %s489 = scalar_select %p488, %s485, 1
        %s490 = smul.addr %s487, 2
        %s491 = sadd.s32 %s489, %s490
        %s492 = smul.addr %s491, 8
        %s493 = scalar_lea.vmem %s0, %s492
        %p494 = pneg %p67
        %p495 = pneg %p64
        %p496 = scmp.lt.s32.totalorder %s36, 1
        %s497 = scalar_select %p496, %s36, 1
        %s498 = smul.addr %s497, 8
        %s499 = scalar_lea.vmem %s1, %s498
        %p500 = pneg %p93
        %p501 = pneg %p90
        %s502 = smul.u32 2, %s37
        %p503 = scmp.lt.s32.totalorder %s502, 1
        %s504 = scalar_select %p503, %s502, 1
        %s505 = smul.addr %s504, 8
        %s506 = scalar_lea.vmem %s2, %s505
        %p507 = pneg %p119
        %p508 = pneg %p116
        %s509 = smul.u32 2, %s37
        %p510 = scmp.lt.s32.totalorder %s509, 1
        %s511 = scalar_select %p510, %s509, 1
        %s512 = smul.addr %s511, 8
        %s513 = scalar_lea.vmem %s3, %s512
        %p514 = pneg %p145
        %p515 = pneg %p142
        %p516 = pneg %p166
        %p517 = pneg %p163
        %p518 = pneg %p187
        %p519 = pneg %p184
        %p520 = pneg %p208
        %p521 = pneg %p205
        %p522 = pneg %p229
        %p523 = pneg %p226
        %p524 = pneg %p250
        %p525 = pneg %p247
        %p526 = pneg %p271
        %p527 = pneg %p268
        %p528 = pneg %p292
        %p529 = pneg %p289
        %p530 = pneg %p313
        %p531 = pneg %p310
        %p532 = pneg %p341
        %p533 = pneg %p338
        %s534 = sand.u32 %s328, 1
        %s535 = scalar_lea.sflag [#allocation3], %s534
        %s536 = sand.u32 %s328, 1
        %s537 = smul.addr %s536, 8
        %s538 = scalar_lea.vmem [#allocation2], %s537
        %p539 = pneg %p369
        %p540 = pneg %p366
        %s541 = sand.u32 %s32, 1
        %s542 = scalar_lea.sflag [#allocation5], %s541
        %s543 = sand.u32 %s356, 1
        %s544 = smul.addr %s543, 8
        %s545 = scalar_lea.vmem [#allocation4], %s544
        %p546 = pneg %p397
        %p547 = pneg %p394
        %s548 = sand.u32 %s32, 1
        %s549 = scalar_lea.sflag [#allocation5], %s548
        %s550 = sand.u32 %s384, 1
        %s551 = smul.addr %s550, 8
        %s552 = scalar_lea.vmem [#allocation6], %s551
        %s553 = smul.u32 2, %s37
        %p554 = scmp.lt.s32.totalorder %s36, 1
        %s555 = scalar_select %p554, %s36, 1
        %p556 = scmp.lt.s32.totalorder %s553, 1
        %s557 = scalar_select %p556, %s553, 1
        %s558 = smul.addr %s555, 2
        %s559 = sadd.s32 %s557, %s558
        %s560 = smul.addr %s559, 8
        %s561 = scalar_lea.vmem %s0, %s560
        %s562 = smul.u32 2, %s37
        %p563 = scmp.lt.s32.totalorder %s36, 1
        %s564 = scalar_select %p563, %s36, 1
        %s565 = smul.addr %s564, 8
        %s566 = scalar_lea.vmem %s1, %s565
        %s567 = smul.u32 2, %s37
        %p568 = scmp.lt.s32.totalorder %s567, 1
        %s569 = scalar_select %p568, %s567, 1
        %s570 = smul.addr %s569, 8
        %s571 = scalar_lea.vmem %s2, %s570
        %s572 = smul.u32 2, %s37
        %s573 = smul.u32 2, %s37
        %p574 = scmp.lt.s32.totalorder %s573, 1
        %s575 = scalar_select %p574, %s573, 1
        %s576 = smul.addr %s575, 8
        %s577 = scalar_lea.vmem %s3, %s576
        %s578 = smul.u32 2, %s37
        %s579 = smul.u32 2, %s37
        %s580 = smul.u32 2, %s37
        %s581 = smul.u32 2, %s37
        %v583 = vld [vmem:[%s561] sm:$0xff]
        %v584 = vld [vmem:[%s561 + $0x8] sm:$0xff]
        %v585 = vld [vmem:[%s566] sm:$0x3f]
        %v586 = vmul.f32 %v583, %v583
        %v587 = vmul.f32 %v584, %v584
        %vm588 = vcmask 261120
        %v589 = vsel %vm588, %v586, 0.0
        %590 = vadd.xlane.f32.xlu0 %v589
        %v591 = vpop.xlane.xlu0 %590
        %v592 = vsel %vm588, %v587, 0.0
        %593 = vadd.xlane.f32.xlu0 %v592
        %v594 = vpop.xlane.xlu0 %593
        %v595 = vrcp.pop 32.0
        %v596 = vmul.f32 32.0, %v595
        %v597 = vsub.f32 1.0, %v596
        %v598 = vmul.f32 %v595, %v597
        %v599 = vadd.f32 %v595, %v598
        %vm600 = vweird.f32 %v595
        %v601 = vsel %vm600, %v595, %v599
        %v602 = vmul.f32 %v591, %v601
        %v603 = vmul.f32 %v594, %v601
        %v604 = vadd.f32 %v602, 1e-05
        %v605 = vadd.f32 %v603, 1e-05
        %v606 = vrsqrt.pop %v604
        %v607 = vmul.f32 %v606, %v604
        %v608 = vmul.f32 %v607, %v606
        %v609 = vmul.f32 0.5, %v608
        %v610 = vsub.f32 1.5, %v609
        %v611 = vmul.f32 %v606, %v610
        %vm612 = vweird.f32 %v604
        %vm613 = vweird.f32 %v606
        %vm614 = vmor %vm612, %vm613
        %v615 = vsel %vm614, %v606, %v611
        %v616 = vrsqrt.pop %v605
        %v617 = vmul.f32 %v616, %v605
        %v618 = vmul.f32 %v617, %v616
        %v619 = vmul.f32 0.5, %v618
        %v620 = vsub.f32 1.5, %v619
        %v621 = vmul.f32 %v616, %v620
        %vm622 = vweird.f32 %v605
        %vm623 = vweird.f32 %v616
        %vm624 = vmor %vm622, %vm623
        %v625 = vsel %vm624, %v616, %v621
        %v626 = vmul.f32 %v583, %v615
        %v627 = vmul.f32 %v584, %v625
        %v628 = vld [vmem:[%s4] sm:$0x1]
        %v630 = vperm.slane %v628, 0
        %v632 = vmul.f32 %v626, %v630
        %v633 = vmul.f32 %v627, %v630
        %v634 = vadd.f32 %v585, 1.0
        %v635 = vperm.slane %v634, 1
        %v636 = vmul.f32 %v632, %v635
        %v637 = vmul.f32 %v633, %v635
        %v638 = vperm.slane %v585, 0
        %v639 = vadd.f32 %v636, %v638
        %v640 = vadd.f32 %v637, %v638
        %v641 = vpack.c.bf16 %v640, %v639
        %v642 = vld [vmem:[%s9] sm:$0xf]
        %v643 = vld [vmem:[%s9 + $0x4] sm:$0xf]
        %v644 = vld [vmem:[%s9 + $0x8] sm:$0xf]
        %v645 = vld [vmem:[%s9 + $0xc] sm:$0xf]
        %v650 = vunpack.c.l.b16 %v642
        %v651 = vunpack.c.l.b16 %v643
        %v652 = vunpack.c.l.b16 %v644
        %v653 = vunpack.c.l.b16 %v645
        %v654 = vpack.c.b16 %v651, %v650
        %v655 = vpack.c.b16 %v653, %v652
        %v659 = vsel %vm588, %v641, 0
        %661 = vmatpush.bf16.msra.mxu0 0
        %662 = vmatpush.bf16.msra.mxu0 0
        %663 = vmatpush.bf16.msra.mxu0 0
        %664 = vmatpush.bf16.msra.mxu0 0
        %665 = vmatpush.bf16.msra.mxu0 0
        %666 = vmatpush.bf16.msra.mxu0 0
        %667 = vmatpush.bf16.msra.mxu0 %v655
        %668 = vmatpush.bf16.msra.mxu0 %v654
        %669 = vmatmul.bf16.gmra.mxu0 %v659
        %v670 = vpop.f32.mrf.mxu0
        %v671 = vadd.f32 0.0, %v670
        %v672 = vpop.f32.mrf.mxu0
        %v673 = vadd.f32 0.0, %v672
        %674 = vdwg.mxu0
        %v675 = vld [vmem:[%s10] sm:$0xf]
        %v676 = vld [vmem:[%s10 + $0x4] sm:$0xf]
        %v677 = vld [vmem:[%s10 + $0x8] sm:$0xf]
        %v678 = vld [vmem:[%s10 + $0xc] sm:$0xf]
        %v683 = vunpack.c.l.b16 %v675
        %v684 = vunpack.c.l.b16 %v676
        %v685 = vunpack.c.l.b16 %v677
        %v686 = vunpack.c.l.b16 %v678
        %v687 = vpack.c.b16 %v684, %v683
        %v688 = vpack.c.b16 %v686, %v685
        %691 = vmatpush.bf16.msra.mxu0 0
        %692 = vmatpush.bf16.msra.mxu0 0
        %693 = vmatpush.bf16.msra.mxu0 0
        %694 = vmatpush.bf16.msra.mxu0 0
        %695 = vmatpush.bf16.msra.mxu0 0
        %696 = vmatpush.bf16.msra.mxu0 0
        %697 = vmatpush.bf16.msra.mxu0 %v688
        %698 = vmatpush.bf16.msra.mxu0 %v687
        %699 = vmatmul.bf16.gmra.mxu0 %v659
        %v700 = vpop.f32.mrf.mxu0
        %v701 = vadd.f32 0.0, %v700
        %v702 = vpop.f32.mrf.mxu0
        %v703 = vadd.f32 0.0, %v702
        %704 = vdwg.mxu0
        %v705 = vld [vmem:[%s11] sm:$0xf]
        %v706 = vld [vmem:[%s11 + $0x4] sm:$0xf]
        %v707 = vld [vmem:[%s11 + $0x8] sm:$0xf]
        %v708 = vld [vmem:[%s11 + $0xc] sm:$0xf]
        %v713 = vunpack.c.l.b16 %v705
        %v714 = vunpack.c.l.b16 %v706
        %v715 = vunpack.c.l.b16 %v707
        %v716 = vunpack.c.l.b16 %v708
        %v717 = vpack.c.b16 %v714, %v713
        %v718 = vpack.c.b16 %v716, %v715
        %721 = vmatpush.bf16.msra.mxu0 0
        %722 = vmatpush.bf16.msra.mxu0 0
        %723 = vmatpush.bf16.msra.mxu0 0
        %724 = vmatpush.bf16.msra.mxu0 0
        %725 = vmatpush.bf16.msra.mxu0 0
        %726 = vmatpush.bf16.msra.mxu0 0
        %727 = vmatpush.bf16.msra.mxu0 %v718
        %728 = vmatpush.bf16.msra.mxu0 %v717
        %729 = vmatmul.bf16.gmra.mxu0 %v659
        %v730 = vpop.f32.mrf.mxu0
        %v731 = vadd.f32 0.0, %v730
        %v732 = vpop.f32.mrf.mxu0
        %v733 = vadd.f32 0.0, %v732
        %734 = vdwg.mxu0
        %v735 = vld [vmem:[%s5] sm:$0x1]
        %v736 = vld [vmem:[%s6] sm:$0x1]
        %v737 = vsel %vm588, %v671, 0.0
        %738 = vadd.xlane.f32.xlu0 %v737
        %v739 = vpop.xlane.xlu0 %738
        %v740 = vsel %vm588, %v673, 0.0
        %741 = vadd.xlane.f32.xlu0 %v740
        %v742 = vpop.xlane.xlu0 %741
        %v743 = vmul.f32 %v739, %v601
        %v744 = vmul.f32 %v742, %v601
        %v745 = vsub.f32 %v671, %v743
        %v746 = vsub.f32 %v673, %v744
        %v747 = vmul.f32 %v745, %v745
        %v748 = vmul.f32 %v746, %v746
        %v749 = vsel %vm588, %v747, 0.0
        %750 = vadd.xlane.f32.xlu0 %v749
        %v751 = vpop.xlane.xlu0 %750
        %v752 = vsel %vm588, %v748, 0.0
        %753 = vadd.xlane.f32.xlu0 %v752
        %v754 = vpop.xlane.xlu0 %753
        %v755 = vmul.f32 %v751, %v601
        %v756 = vmul.f32 %v754, %v601
        %v757 = vadd.f32 %v755, 1e-05
        %v758 = vadd.f32 %v756, 1e-05
        %v759 = vrsqrt.pop %v757
        %v760 = vmul.f32 %v759, %v757
        %v761 = vmul.f32 %v760, %v759
        %v762 = vmul.f32 0.5, %v761
        %v763 = vsub.f32 1.5, %v762
        %v764 = vmul.f32 %v759, %v763
        %vm765 = vweird.f32 %v757
        %vm766 = vweird.f32 %v759
        %vm767 = vmor %vm765, %vm766
        %v768 = vsel %vm767, %v759, %v764
        %v769 = vrsqrt.pop %v758
        %v770 = vmul.f32 %v769, %v758
        %v771 = vmul.f32 %v770, %v769
        %v772 = vmul.f32 0.5, %v771
        %v773 = vsub.f32 1.5, %v772
        %v774 = vmul.f32 %v769, %v773
        %vm775 = vweird.f32 %v758
        %vm776 = vweird.f32 %v769
        %vm777 = vmor %vm775, %vm776
        %v778 = vsel %vm777, %v769, %v774
        %v779 = vmul.f32 %v745, %v768
        %v780 = vmul.f32 %v746, %v778
        %v782 = vperm.slane %v735, 0
        %v784 = vmul.f32 %v779, %v782
        %v785 = vmul.f32 %v780, %v782
        %v787 = vperm.slane %v736, 0
        %v789 = vadd.f32 %v784, %v787
        %v790 = vadd.f32 %v785, %v787
        %v791 = vld [vmem:[%s7] sm:$0x1]
        %v792 = vld [vmem:[%s8] sm:$0x1]
        %vm793 = vcmask 130048
        %v794 = vsel %vm793, %v701, 0.0
        %795 = vadd.xlane.f32.xlu0 %v794
        %v796 = vpop.xlane.xlu0 %795
        %v797 = vsel %vm793, %v703, 0.0
        %798 = vadd.xlane.f32.xlu0 %v797
        %v799 = vpop.xlane.xlu0 %798
        %v800 = vrcp.pop 16.0
        %v801 = vmul.f32 16.0, %v800
        %v802 = vsub.f32 1.0, %v801
        %v803 = vmul.f32 %v800, %v802
        %v804 = vadd.f32 %v800, %v803
        %vm805 = vweird.f32 %v800
        %v806 = vsel %vm805, %v800, %v804
        %v807 = vmul.f32 %v796, %v806
        %v808 = vmul.f32 %v799, %v806
        %v809 = vsub.f32 %v701, %v807
        %v810 = vsub.f32 %v703, %v808
        %v811 = vmul.f32 %v809, %v809
        %v812 = vmul.f32 %v810, %v810
        %v813 = vsel %vm793, %v811, 0.0
        %814 = vadd.xlane.f32.xlu0 %v813
        %v815 = vpop.xlane.xlu0 %814
        %v816 = vsel %vm793, %v812, 0.0
        %817 = vadd.xlane.f32.xlu0 %v816
        %v818 = vpop.xlane.xlu0 %817
        %v819 = vmul.f32 %v815, %v806
        %v820 = vmul.f32 %v818, %v806
        %v821 = vadd.f32 %v819, 1e-05
        %v822 = vadd.f32 %v820, 1e-05
        %v823 = vrsqrt.pop %v821
        %v824 = vmul.f32 %v823, %v821
        %v825 = vmul.f32 %v824, %v823
        %v826 = vmul.f32 0.5, %v825
        %v827 = vsub.f32 1.5, %v826
        %v828 = vmul.f32 %v823, %v827
        %vm829 = vweird.f32 %v821
        %vm830 = vweird.f32 %v823
        %vm831 = vmor %vm829, %vm830
        %v832 = vsel %vm831, %v823, %v828
        %v833 = vrsqrt.pop %v822
        %v834 = vmul.f32 %v833, %v822
        %v835 = vmul.f32 %v834, %v833
        %v836 = vmul.f32 0.5, %v835
        %v837 = vsub.f32 1.5, %v836
        %v838 = vmul.f32 %v833, %v837
        %vm839 = vweird.f32 %v822
        %vm840 = vweird.f32 %v833
        %vm841 = vmor %vm839, %vm840
        %v842 = vsel %vm841, %v833, %v838
        %v843 = vmul.f32 %v809, %v832
        %v844 = vmul.f32 %v810, %v842
        %v846 = vperm.slane %v791, 0
        %v848 = vmul.f32 %v843, %v846
        %v849 = vmul.f32 %v844, %v846
        %v851 = vperm.slane %v792, 0
        %v853 = vadd.f32 %v848, %v851
        %v854 = vadd.f32 %v849, %v851
        %v855 = vld [vmem:[%s571] sm:$0xff]
        %v856 = vld [vmem:[%s571 + $0x8] sm:$0xff]
        %v857 = vld [vmem:[%s577] sm:$0xff]
        %v858 = vld [vmem:[%s577 + $0x8] sm:$0xff]
        %v859 = vmul.f32 %v789, %v855
        %v860 = vmul.f32 %v790, %v856
        %863 = vrot.lane.b32.xlu0 %v857, 4
        %v864 = vpop.permute.xlu0 %863
        %865 = vrot.lane.b32.xlu0 %v858, 4
        %v866 = vpop.permute.xlu0 %865
        %v869 = vmul.f32 %v789, %v864
        %v870 = vmul.f32 %v790, %v866
        %873 = vrot.lane.b32.xlu0 %v869, 124
        %v874 = vpop.permute.xlu0 %873
        %875 = vrot.lane.b32.xlu0 %v870, 124
        %v876 = vpop.permute.xlu0 %875
        %v879 = vsub.f32 %v859, %v874
        %v880 = vsub.f32 %v860, %v876
        %883 = vrot.lane.b32.xlu0 %v855, 4
        %v884 = vpop.permute.xlu0 %883
        %885 = vrot.lane.b32.xlu0 %v856, 4
        %v886 = vpop.permute.xlu0 %885
        %v889 = vmul.f32 %v789, %v884
        %v890 = vmul.f32 %v790, %v886
        %v891 = vmul.f32 %v789, %v857
        %v892 = vmul.f32 %v790, %v858
        %895 = vrot.lane.b32.xlu0 %v891, 4
        %v896 = vpop.permute.xlu0 %895
        %897 = vrot.lane.b32.xlu0 %v892, 4
        %v898 = vpop.permute.xlu0 %897
        %v901 = vadd.f32 %v889, %v896
        %v902 = vadd.f32 %v890, %v898
        %903 = vrot.lane.b32.xlu0 %v855, 8
        %v904 = vpop.permute.xlu0 %903
        %905 = vrot.lane.b32.xlu0 %v856, 8
        %v906 = vpop.permute.xlu0 %905
        %v909 = vmul.f32 %v789, %v904
        %v910 = vmul.f32 %v790, %v906
        %911 = vrot.lane.b32.xlu0 %v857, 12
        %v912 = vpop.permute.xlu0 %911
        %913 = vrot.lane.b32.xlu0 %v858, 12
        %v914 = vpop.permute.xlu0 %913
        %v917 = vmul.f32 %v789, %v912
        %v918 = vmul.f32 %v790, %v914
        %921 = vrot.lane.b32.xlu0 %v917, 124
        %v922 = vpop.permute.xlu0 %921
        %923 = vrot.lane.b32.xlu0 %v918, 124
        %v924 = vpop.permute.xlu0 %923
        %v927 = vsub.f32 %v909, %v922
        %v928 = vsub.f32 %v910, %v924
        %929 = vrot.lane.b32.xlu0 %v855, 12
        %v930 = vpop.permute.xlu0 %929
        %931 = vrot.lane.b32.xlu0 %v856, 12
        %v932 = vpop.permute.xlu0 %931
        %v935 = vmul.f32 %v789, %v930
        %v936 = vmul.f32 %v790, %v932
        %937 = vrot.lane.b32.xlu0 %v857, 8
        %v938 = vpop.permute.xlu0 %937
        %939 = vrot.lane.b32.xlu0 %v858, 8
        %v940 = vpop.permute.xlu0 %939
        %v943 = vmul.f32 %v789, %v938
        %v944 = vmul.f32 %v790, %v940
        %947 = vrot.lane.b32.xlu0 %v943, 4
        %v948 = vpop.permute.xlu0 %947
        %949 = vrot.lane.b32.xlu0 %v944, 4
        %v950 = vpop.permute.xlu0 %949
        %v953 = vadd.f32 %v935, %v948
        %v954 = vadd.f32 %v936, %v950
        %955 = vrot.lane.b32.xlu0 %v855, 16
        %v956 = vpop.permute.xlu0 %955
        %957 = vrot.lane.b32.xlu0 %v856, 16
        %v958 = vpop.permute.xlu0 %957
        %v961 = vmul.f32 %v789, %v956
        %v962 = vmul.f32 %v790, %v958
        %963 = vrot.lane.b32.xlu0 %v857, 20
        %v964 = vpop.permute.xlu0 %963
        %965 = vrot.lane.b32.xlu0 %v858, 20
        %v966 = vpop.permute.xlu0 %965
        %v969 = vmul.f32 %v789, %v964
        %v970 = vmul.f32 %v790, %v966
        %973 = vrot.lane.b32.xlu0 %v969, 124
        %v974 = vpop.permute.xlu0 %973
        %975 = vrot.lane.b32.xlu0 %v970, 124
        %v976 = vpop.permute.xlu0 %975
        %v979 = vsub.f32 %v961, %v974
        %v980 = vsub.f32 %v962, %v976
        %981 = vrot.lane.b32.xlu0 %v855, 20
        %v982 = vpop.permute.xlu0 %981
        %983 = vrot.lane.b32.xlu0 %v856, 20
        %v984 = vpop.permute.xlu0 %983
        %v987 = vmul.f32 %v789, %v982
        %v988 = vmul.f32 %v790, %v984
        %989 = vrot.lane.b32.xlu0 %v857, 16
        %v990 = vpop.permute.xlu0 %989
        %991 = vrot.lane.b32.xlu0 %v858, 16
        %v992 = vpop.permute.xlu0 %991
        %v995 = vmul.f32 %v789, %v990
        %v996 = vmul.f32 %v790, %v992
        %999 = vrot.lane.b32.xlu0 %v995, 4
        %v1000 = vpop.permute.xlu0 %999
        %1001 = vrot.lane.b32.xlu0 %v996, 4
        %v1002 = vpop.permute.xlu0 %1001
        %v1005 = vadd.f32 %v987, %v1000
        %v1006 = vadd.f32 %v988, %v1002
        %1007 = vrot.lane.b32.xlu0 %v855, 24
        %v1008 = vpop.permute.xlu0 %1007
        %1009 = vrot.lane.b32.xlu0 %v856, 24
        %v1010 = vpop.permute.xlu0 %1009
        %v1013 = vmul.f32 %v789, %v1008
        %v1014 = vmul.f32 %v790, %v1010
        %1015 = vrot.lane.b32.xlu0 %v857, 28
        %v1016 = vpop.permute.xlu0 %1015
        %1017 = vrot.lane.b32.xlu0 %v858, 28
        %v1018 = vpop.permute.xlu0 %1017
        %v1021 = vmul.f32 %v789, %v1016
        %v1022 = vmul.f32 %v790, %v1018
        %1025 = vrot.lane.b32.xlu0 %v1021, 124
        %v1026 = vpop.permute.xlu0 %1025
        %1027 = vrot.lane.b32.xlu0 %v1022, 124
        %v1028 = vpop.permute.xlu0 %1027
        %v1031 = vsub.f32 %v1013, %v1026
        %v1032 = vsub.f32 %v1014, %v1028
        %1033 = vrot.lane.b32.xlu0 %v855, 28
        %v1034 = vpop.permute.xlu0 %1033
        %1035 = vrot.lane.b32.xlu0 %v856, 28
        %v1036 = vpop.permute.xlu0 %1035
        %v1039 = vmul.f32 %v789, %v1034
        %v1040 = vmul.f32 %v790, %v1036
        %1041 = vrot.lane.b32.xlu0 %v857, 24
        %v1042 = vpop.permute.xlu0 %1041
        %1043 = vrot.lane.b32.xlu0 %v858, 24
        %v1044 = vpop.permute.xlu0 %1043
        %v1047 = vmul.f32 %v789, %v1042
        %v1048 = vmul.f32 %v790, %v1044
        %1051 = vrot.lane.b32.xlu0 %v1047, 4
        %v1052 = vpop.permute.xlu0 %1051
        %1053 = vrot.lane.b32.xlu0 %v1048, 4
        %v1054 = vpop.permute.xlu0 %1053
        %v1057 = vadd.f32 %v1039, %v1052
        %v1058 = vadd.f32 %v1040, %v1054
        %vm1059 = vcmask 31744
        %v1060 = vsel %vm1059, %v879, %v901
        %v1061 = vsel %vm1059, %v880, %v902
        %vm1062 = vcmask 64512
        %v1063 = vsel %vm1062, %v1060, %v927
        %v1064 = vsel %vm1062, %v1061, %v928
        %vm1065 = vcmask 97280
        %v1066 = vsel %vm1065, %v1063, %v953
        %v1067 = vsel %vm1065, %v1064, %v954
        %v1068 = vsel %vm793, %v1066, %v979
        %v1069 = vsel %vm793, %v1067, %v980
        %vm1070 = vcmask 162816
        %v1071 = vsel %vm1070, %v1068, %v1005
        %v1072 = vsel %vm1070, %v1069, %v1006
        %vm1073 = vcmask 195584
        %v1074 = vsel %vm1073, %v1071, %v1031
        %v1075 = vsel %vm1073, %v1072, %v1032
        %vm1076 = vcmask 228352
        %v1077 = vsel %vm1076, %v1074, %v1057
        %v1078 = vsel %vm1076, %v1075, %v1058
        %v1079 = vpack.c.bf16 %v1077, %v1077
        %v1080 = vpack.c.bf16 %v1078, %v1078
        %vm1081 = vcmask 257024
        %1082 = vst.msk [vmem:[%s538] sm:$0xf] %vm1081, %v1079
        %1083 = vst.msk [vmem:[%s538 + $0x4] sm:$0xf] %vm1081, %v1080
        %v1084 = vmul.f32 %v853, %v855
        %v1085 = vmul.f32 %v854, %v856
        %v1086 = vmul.f32 %v853, %v864
        %v1087 = vmul.f32 %v854, %v866
        %1090 = vrot.lane.b32.xlu0 %v1086, 124
        %v1091 = vpop.permute.xlu0 %1090
        %1092 = vrot.lane.b32.xlu0 %v1087, 124
        %v1093 = vpop.permute.xlu0 %1092
        %v1096 = vsub.f32 %v1084, %v1091
        %v1097 = vsub.f32 %v1085, %v1093
        %v1098 = vmul.f32 %v853, %v884
        %v1099 = vmul.f32 %v854, %v886
        %v1100 = vmul.f32 %v853, %v857
        %v1101 = vmul.f32 %v854, %v858
        %1104 = vrot.lane.b32.xlu0 %v1100, 4
        %v1105 = vpop.permute.xlu0 %1104
        %1106 = vrot.lane.b32.xlu0 %v1101, 4
        %v1107 = vpop.permute.xlu0 %1106
        %v1110 = vadd.f32 %v1098, %v1105
        %v1111 = vadd.f32 %v1099, %v1107
        %v1112 = vmul.f32 %v853, %v904
        %v1113 = vmul.f32 %v854, %v906
        %v1114 = vmul.f32 %v853, %v912
        %v1115 = vmul.f32 %v854, %v914
        %1118 = vrot.lane.b32.xlu0 %v1114, 124
        %v1119 = vpop.permute.xlu0 %1118
        %1120 = vrot.lane.b32.xlu0 %v1115, 124
        %v1121 = vpop.permute.xlu0 %1120
        %v1124 = vsub.f32 %v1112, %v1119
        %v1125 = vsub.f32 %v1113, %v1121
        %v1126 = vmul.f32 %v853, %v930
        %v1127 = vmul.f32 %v854, %v932
        %v1128 = vmul.f32 %v853, %v938
        %v1129 = vmul.f32 %v854, %v940
        %1132 = vrot.lane.b32.xlu0 %v1128, 4
        %v1133 = vpop.permute.xlu0 %1132
        %1134 = vrot.lane.b32.xlu0 %v1129, 4
        %v1135 = vpop.permute.xlu0 %1134
        %v1138 = vadd.f32 %v1126, %v1133
        %v1139 = vadd.f32 %v1127, %v1135
        %v1140 = vsel %vm1059, %v1096, %v1110
        %v1141 = vsel %vm1059, %v1097, %v1111
        %v1142 = vsel %vm1062, %v1140, %v1124
        %v1143 = vsel %vm1062, %v1141, %v1125
        %v1144 = vsel %vm1065, %v1142, %v1138
        %v1145 = vsel %vm1065, %v1143, %v1139
        %v1146 = vpack.c.bf16 %v1144, %v1144
        %v1147 = vpack.c.bf16 %v1145, %v1145
        %vm1148 = vcmask 125952
        %1149 = vst.msk [vmem:[%s545] sm:$0xf] %vm1148, %v1146
        %1150 = vst.msk [vmem:[%s545 + $0x4] sm:$0xf] %vm1148, %v1147
        %v1151 = vpack.c.bf16 %v731, %v731
        %v1152 = vpack.c.bf16 %v733, %v733
        %1153 = vst.msk [vmem:[%s552] sm:$0xf] %vm1148, %v1151
        %1154 = vst.msk [vmem:[%s552 + $0x4] sm:$0xf] %vm1148, %v1152
        %s1155 = sand.u32 %s328, 1
        %s1156 = scalar_lea.sflag [#allocation3], %s1155
        %s1157 = sand.u32 %s328, 1
        %s1158 = smul.addr %s1157, 8
        %s1159 = scalar_lea.vmem [#allocation2], %s1158
        %s1160 = sand.u32 %s32, 1
        %s1161 = scalar_lea.sflag [#allocation5], %s1160
        %s1162 = sand.u32 %s356, 1
        %s1163 = smul.addr %s1162, 8
        %s1164 = scalar_lea.vmem [#allocation4], %s1163
        %s1165 = sand.u32 %s32, 1
        %s1166 = scalar_lea.sflag [#allocation5], %s1165
        %s1167 = sand.u32 %s384, 1
        %s1168 = smul.addr %s1167, 8
        %s1169 = scalar_lea.vmem [#allocation6], %s1168
        // Predicated region
        $region69: #{tpu_custom_call.1} parent=67 // pred_check
          %p1170 = pneg %p338
        $region70: #{tpu_custom_call.1} parent=67 // pred_check_branch
          %1172 = sbr.rel (%p1170) target = $region72
        $region71: #{tpu_custom_call.1} parent=67 // pred_region
          %s1173 = smul.u32 2, %s37
          %1175 = vsyncadd %s1156, 0
          %s1176 = smul.addr %s36, 2
          %s1177 = sadd.s32 %s1173, %s1176
          %s1178 = smul.addr %s1177, 4
          %s1179 = scalar_lea.hbm %s12, %s1178
          %s1180 = sshll.u32 %s1159, 4
          %s1181 = int_to_ptr.vmem [resolvable:$true] %s1180
          %s1182 = sshll.u32 %s1179, 4
          %s1183 = int_to_ptr.hbm [resolvable:$true] %s1182
          %1188 = dma.vmem_to_hbm [thread:$0]  %s1181, 128, %s1183, %s1156, 64, 64, 4
        $region72: #{tpu_custom_call.1} parent=67 // pred_fallthru
          _
        // Predicated region
        $region73: #{tpu_custom_call.1} parent=67 // pred_check
          %p1189 = pneg %p366
        $region74: #{tpu_custom_call.1} parent=67 // pred_check_branch
          %1191 = sbr.rel (%p1189) target = $region76
        $region75: #{tpu_custom_call.1} parent=67 // pred_region
          %s1192 = smul.u32 2, %s37
          %1194 = vsyncadd %s1161, 0
          %s1195 = smul.addr %s36, 2
          %s1196 = sadd.s32 %s1192, %s1195
          %s1197 = smul.addr %s1196, 4
          %s1198 = scalar_lea.hbm %s13, %s1197
          %s1199 = sshll.u32 %s1164, 4
          %s1200 = int_to_ptr.vmem [resolvable:$true] %s1199
          %s1201 = sshll.u32 %s1198, 4
          %s1202 = int_to_ptr.hbm [resolvable:$true] %s1201
          %1207 = dma.vmem_to_hbm [thread:$0]  %s1200, 128, %s1202, %s1161, 64, 64, 4
        $region76: #{tpu_custom_call.1} parent=67 // pred_fallthru
          _
        // Predicated region
        $region77: #{tpu_custom_call.1} parent=67 // pred_check
          %p1208 = pneg %p394
        $region78: #{tpu_custom_call.1} parent=67 // pred_check_branch
          %1210 = sbr.rel (%p1208) target = $region80
        $region79: #{tpu_custom_call.1} parent=67 // pred_region
          %s1211 = smul.u32 2, %s37
          %1213 = vsyncadd %s1166, 0
          %s1214 = smul.addr %s36, 2
          %s1215 = sadd.s32 %s1211, %s1214
          %s1216 = smul.addr %s1215, 4
          %s1217 = scalar_lea.hbm %s14, %s1216
          %s1218 = sshll.u32 %s1169, 4
          %s1219 = int_to_ptr.vmem [resolvable:$true] %s1218
          %s1220 = sshll.u32 %s1217, 4
          %s1221 = int_to_ptr.hbm [resolvable:$true] %s1220
          %1226 = dma.vmem_to_hbm [thread:$0]  %s1219, 128, %s1221, %s1166, 64, 64, 4
        $region80: #{tpu_custom_call.1} parent=67 // pred_fallthru
          _
      $region68: #{tpu_custom_call.1} parent=5 // pred_fallthru
        _
      %p1227 = scmp.le.s32.totalorder 2, %s27
      // Predicated region
      $region81: #{tpu_custom_call.1} parent=5 // pred_check
        %p1228 = pneg %p1227
      $region82: #{tpu_custom_call.1} parent=5 // pred_check_branch
        %1230 = sbr.rel (%p1228) target = $region84
      $region83: #{tpu_custom_call.1} parent=5 // pred_region
        %s1231 = ssub.s32 %s27, 2
        // Predicated region
        $region85: #{tpu_custom_call.1} parent=83 // pred_check
          %p1232 = pneg %p344
        $region86: #{tpu_custom_call.1} parent=83 // pred_check_branch
          %1234 = sbr.rel (%p1232) target = $region88
        $region87: #{tpu_custom_call.1} parent=83 // pred_region
          %s1235 = sand.u32 %s329, 1
          %s1236 = scalar_lea.sflag [#allocation3], %s1235
          %s1237 = sand.u32 %s329, 1
          %s1238 = smul.addr %s1237, 8
          %s1239 = scalar_lea.vmem [#allocation2], %s1238
          %1241 = dma.done %s1236, 128
        $region88: #{tpu_custom_call.1} parent=83 // pred_fallthru
          _
        // Predicated region
        $region89: #{tpu_custom_call.1} parent=83 // pred_check
          %p1242 = pneg %p372
        $region90: #{tpu_custom_call.1} parent=83 // pred_check_branch
          %1244 = sbr.rel (%p1242) target = $region92
        $region91: #{tpu_custom_call.1} parent=83 // pred_region
          %s1245 = sand.u32 %s33, 1
          %s1246 = scalar_lea.sflag [#allocation5], %s1245
          %s1247 = sand.u32 %s357, 1
          %s1248 = smul.addr %s1247, 8
          %s1249 = scalar_lea.vmem [#allocation4], %s1248
          %1251 = dma.done %s1246, 128
        $region92: #{tpu_custom_call.1} parent=83 // pred_fallthru
          _
        // Predicated region
        $region93: #{tpu_custom_call.1} parent=83 // pred_check
          %p1252 = pneg %p400
        $region94: #{tpu_custom_call.1} parent=83 // pred_check_branch
          %1254 = sbr.rel (%p1252) target = $region96
        $region95: #{tpu_custom_call.1} parent=83 // pred_region
          %s1255 = sand.u32 %s33, 1
          %s1256 = scalar_lea.sflag [#allocation5], %s1255
          %s1257 = sand.u32 %s385, 1
          %s1258 = smul.addr %s1257, 8
          %s1259 = scalar_lea.vmem [#allocation6], %s1258
          %1261 = dma.done %s1256, 128
        $region96: #{tpu_custom_call.1} parent=83 // pred_fallthru
          _
      $region84: #{tpu_custom_call.1} parent=5 // pred_fallthru
        _
    $region6: #{tpu_custom_call.1} parent=1 // loop_footer
      %s31 = sadd.s32 1, %s27
    $region7: #{tpu_custom_call.1} parent=1 // loop_footer_branch
      %26 = sbr.rel target = $region3
    $region8: #{tpu_custom_call.1} parent=1 // loop_exit
      _
    %1262 = vsyncpa [#allocation3], 1
    %s1263 = scalar_lea.sflag [#allocation3], 1
    %1264 = vsyncpa %s1263, 1
    %1265 = vsyncpa [#allocation5], 1
    %s1266 = scalar_lea.sflag [#allocation5], 1
    %1267 = vsyncpa %s1266, 1

</llo_original>
